<compile_context>
chip_gen: v6e
topology: v6e:2x2x1
jax: 0.10.0
libtpu: 0.0.40
codegen_flags: <defaults>
</compile_context>

<pallas_src>
import math

import jax
import jax.numpy as jnp
from jax.experimental import pallas as pl
from jax.experimental.pallas import tpu as pltpu


# ----------------------------- helpers ---------------------------------------
def _elu(x):
    # ELU(alpha=1); clamp the exp argument so the unselected branch never overflows.
    return jnp.where(x > 0, x, jnp.exp(jnp.minimum(x, 0.0)) - 1.0)


def _ceil_to(a, m):
    return -(-a // m) * m


# --------------- kernel 1: coef graph-attention (parameter-only, runs once) ---
# Works on the (O*O, F) flattened coef matrix; node selections / reductions are
# expressed as tiny matmuls with constant selection matrices so everything
# stays 2-D.  Called once from prepack_params(), never per forward.
def coef_kernel(cm_ref, wc_ref, bc_ref, watt_t_ref, woutatt_t_ref,
                a_sum_ref, sel_ref, out_ref):
    f32 = jnp.float32
    F = wc_ref.shape[0]          # feature_nums
    fh = wc_ref.shape[1]         # feature_hidden
    O = a_sum_ref.shape[0]       # output_dim

    cf = []
    s = jnp.zeros((cm_ref.shape[0], 1), f32)
    for i in range(F):
        v = cm_ref[:, i:i + 1]                                        # (O*O, 1)
        f = _elu(v * wc_ref[i:i + 1, :] + bc_ref[i:i + 1, :])         # (O*O, fh)
        cf.append(f)
        s = s + jnp.sum(jnp.exp(_elu(f)), axis=1, keepdims=True)      # (O*O, 1)

    cfs = jnp.zeros((cm_ref.shape[0], fh), f32)
    for i in range(F):
        lin = jnp.dot(cf[i], watt_t_ref[i], preferred_element_type=f32)
        cfs = cfs + _elu(jnp.exp(_elu(cf[i])) * lin / s)
    cfs = _elu(cfs / float(F))                                        # (O*O, fh)

    # sum over the second node axis  ->  (O, fh)
    coef_sum = jnp.dot(a_sum_ref[...], jnp.exp(_elu(cfs)),
                       preferred_element_type=f32)

    outs = []
    for i in range(O):
        nf = jnp.dot(sel_ref[i], cfs, preferred_element_type=f32)     # cfs[:, i, :]
        p = jnp.exp(_elu(nf)) / coef_sum
        outs.append(p * jnp.dot(nf, woutatt_t_ref[i], preferred_element_type=f32))
    out_ref[...] = jnp.concatenate(outs, axis=1)                      # (O, fh*O)


# --------------------------- kernel 2: batched main path ----------------------
def main_kernel(x_ref, w_in_ref, b_in_ref, w_fc1_ref, b_fc1_ref,
                w_heads_ref, b_heads_ref, w_big_ref, gcn_const_ref,
                w_map_ref, b_map_ref, scal_ref, o_ref):
    f32 = jnp.float32
    bf16 = jnp.bfloat16
    OUTW = o_ref.shape[1]

    # MLP trunk: bf16 MXU operands, f32 accumulation / element-wise math.
    h = jnp.dot(x_ref[...].astype(bf16), w_in_ref[...],
                preferred_element_type=f32) + b_in_ref[...]
    h = jnp.maximum(h, 0.0)
    h = jnp.dot(h.astype(bf16), w_fc1_ref[...],
                preferred_element_type=f32) + b_fc1_ref[...]
    h = jnp.maximum(h, 0.0)

    # Per-node heads packed node-major into 64-lane blocks: (TB, O*64).
    heads = jnp.dot(h.astype(bf16), w_heads_ref[...],
                    preferred_element_type=f32) + b_heads_ref[...]
    heads = jnp.maximum(heads, 0.0)

    # Folded nodes_trans_nn + trans_gcn: one MXU matmul.
    #   pre[b, op*NH + j] = sum_{o,k<64} W_nt[op,o] * W_gcn[j,k] * heads[b, o*64+k]
    # plus the batch-constant coef-attention contribution (gcn_const).
    pre = jnp.dot(heads.astype(bf16), w_big_ref[...],
                  preferred_element_type=f32) + gcn_const_ref[...]

    # sigmoid via tanh: single EUP op instead of exp + reciprocal.
    tr = 0.5 * (jnp.tanh(0.5 * pre) + 1.0)                            # (TB, O*NH)

    # output_mapping as a block-diagonal MXU matmul -> lane-dense (TB, 128).
    y = jnp.dot(tr.astype(bf16), w_map_ref[...],
                preferred_element_type=f32) + b_map_ref[...]
    a = scal_ref[0]                                                   # PReLU slope
    y = jnp.where(y > 0.0, y, a * y)
    o_ref[...] = y[:, :OUTW]                                          # narrow store


# ------------------------------ parameters ------------------------------------
def _uniform(key, shape, bound):
    return jax.random.uniform(key, shape, jnp.float32, -bound, bound)


def init_params(key, input_dim, output_dim, feature_nums, feature_hidden=32):
    NH = 64 + feature_hidden * output_dim
    ks = iter(jax.random.split(key, 24))
    P = {}
    P["fc_input_w"] = _uniform(next(ks), (1024, input_dim), 1 / math.sqrt(input_dim))
    P["fc_input_b"] = _uniform(next(ks), (1024,), 1 / math.sqrt(input_dim))
    P["fc1_w"] = _uniform(next(ks), (128, 1024), 1 / math.sqrt(1024))
    P["fc1_b"] = _uniform(next(ks), (128,), 1 / math.sqrt(1024))
    P["head_w"] = _uniform(next(ks), (output_dim, 64, 128), 1 / math.sqrt(128))
    P["head_b"] = _uniform(next(ks), (output_dim, 64), 1 / math.sqrt(128))
    P["coef_w"] = _uniform(next(ks), (feature_nums, feature_hidden), 1.0)   # Linear(1,fh).weight[:,0]
    P["coef_b"] = _uniform(next(ks), (feature_nums, feature_hidden), 1.0)
    P["coef_att_w"] = _uniform(next(ks), (feature_nums, feature_hidden, feature_hidden),
                               1 / math.sqrt(feature_hidden))
    P["out_att_w"] = _uniform(next(ks), (output_dim, feature_hidden, feature_hidden),
                              1 / math.sqrt(feature_hidden))
    P["trans_gcn_w"] = _uniform(next(ks), (NH, NH), 1 / math.sqrt(NH))
    P["nodes_trans_w"] = _uniform(next(ks), (output_dim, output_dim),
                                  1 / math.sqrt(output_dim))
    P["out_map_w"] = _uniform(next(ks), (1, NH), 1 / math.sqrt(NH))
    P["out_map_b"] = _uniform(next(ks), (1,), 1 / math.sqrt(NH))
    P["prelu_a"] = jnp.float32(0.25)
    # coef_m already in permuted (output_dim, output_dim, feature_nums) layout
    P["coef_m"] = jax.random.normal(next(ks), (output_dim, output_dim, feature_nums),
                                    jnp.float32)
    return P


# ---------------- one-time parameter packing (hoisted out of the forward) -----
def prepack_params(P, feature_hidden=32):
    f32 = jnp.float32
    bf16 = jnp.bfloat16
    O = P["head_w"].shape[0]
    F = P["coef_w"].shape[0]
    fh = feature_hidden
    NH = 64 + fh * O                       # logical per-node width (192)

    # ---- coef graph-attention features (parameter-only) via Pallas, once ----
    cm_flat = P["coef_m"].reshape(O * O, F).astype(f32)
    watt_t = jnp.transpose(P["coef_att_w"], (0, 2, 1))
    woutatt_t = jnp.transpose(P["out_att_w"], (0, 2, 1))
    a_idx = jnp.repeat(jnp.arange(O), O)
    a_sum = jnp.zeros((O, O * O), f32).at[a_idx, jnp.arange(O * O)].set(1.0)
    sel = jnp.zeros((O, O, O * O), f32)
    for i in range(O):
        sel = sel.at[i, jnp.arange(O), jnp.arange(O) * O + i].set(1.0)

    coef_att = pl.pallas_call(
        coef_kernel,
        out_shape=jax.ShapeDtypeStruct((O, fh * O), f32),
    )(cm_flat, P["coef_w"], P["coef_b"], watt_t, woutatt_t, a_sum, sel)

    # ---- MLP trunk weights: bf16 for the MXU, f32 biases ----
    w_in = P["fc_input_w"].T.astype(bf16)                  # (Din, 1024)
    b_in = P["fc_input_b"][None, :].astype(f32)            # (1, 1024)
    w_fc1 = P["fc1_w"].T.astype(bf16)                      # (1024, 128)
    b_fc1 = P["fc1_b"][None, :].astype(f32)                # (1, 128)

    # ---- per-node heads packed into 64-lane node blocks (no padding needed) --
    w_heads = jnp.concatenate([P["head_w"][o].T for o in range(O)], axis=1)   # (128, O*64)
    b_heads = jnp.concatenate([P["head_b"][o] for o in range(O)])[None, :]    # (1, O*64)
    w_heads = w_heads.astype(bf16)
    b_heads = b_heads.astype(f32)

    # ---- fold kron(W_nt, I) and kron(I, W_gcn_head_rows) into ONE weight ----
    # W_big[o*64+k, op*NH+j] = W_nt[op, o] * trans_gcn_w[j, k]  (k < 64)
    W_nt = P["nodes_trans_w"].astype(f32)                  # (O, O), indexed [op, o]
    gcn_head = P["trans_gcn_w"].T[:64, :]                  # (64, NH), indexed [k, j]
    w_big = jnp.einsum("po,kj->okpj", W_nt, gcn_head).reshape(O * 64, O * NH)
    w_big = w_big.astype(bf16)                             # (O*64, O*NH)

    # batch-constant coef-attention contribution to trans_gcn's input:
    #   gcn_const[op, j] = ((W_nt @ coef_att) @ trans_gcn_w[:, 64:NH].T)[op, j]
    nca = W_nt @ coef_att                                  # (O, fh*O)
    gcn_const = (nca @ P["trans_gcn_w"][:, 64:NH].T).reshape(1, O * NH).astype(f32)

    # ---- output_mapping as a block-diagonal matmul weight: (O*NH, 128) ------
    MAPW = 128
    w_map = jnp.zeros((O * NH, MAPW), f32)
    for op in range(O):
        w_map = w_map.at[op * NH:(op + 1) * NH, op].set(P["out_map_w"][0])
    w_map = w_map.astype(bf16)
    b_map = jnp.zeros((1, MAPW), f32).at[0, :O].set(P["out_map_b"][0])

    # ---- SMEM scalar: PReLU slope --------------------------------------------
    scal = jnp.reshape(jnp.asarray(P["prelu_a"], f32), (1,))

    return dict(w_in=w_in, b_in=b_in, w_fc1=w_fc1, b_fc1=b_fc1,
                w_heads=w_heads, b_heads=b_heads, w_big=w_big,
                gcn_const=gcn_const, w_map=w_map, b_map=b_map,
                scal=scal, O=O)


# ------------------------------ forward wrapper --------------------------------
def net2_forward(x, packed):
    f32 = jnp.float32
    B, Din = x.shape
    O = packed["O"]
    OUTW = min(128, _ceil_to(O, 8))              # narrow lane-block output width

    # Batch tiling: always pad to a sublane multiple (8); for large B use tiles
    # of up to 512 rows while keeping >= 2 grid steps so both v7x TensorCores
    # get work (harmless on single-TC v5e/v6e).  Non-multiples are padded.
    B8 = _ceil_to(B, 8)
    if B8 <= 256:
        TB = B8                                  # single full-batch tile
    else:
        TB = min(512, max(256, _ceil_to(-(-B8 // 2), 8)))
    Bp = _ceil_to(B8, TB)
    xin = x if Bp == B else jnp.pad(x, ((0, Bp - B), (0, 0)))
    grid = (Bp // TB,)

    def full_spec(arr):
        nd = arr.ndim
        return pl.BlockSpec(arr.shape, lambda i, nd=nd: (0,) * nd)

    dense = [packed["w_in"], packed["b_in"], packed["w_fc1"], packed["b_fc1"],
             packed["w_heads"], packed["b_heads"], packed["w_big"],
             packed["gcn_const"], packed["w_map"], packed["b_map"]]

    out = pl.pallas_call(
        main_kernel,
        out_shape=jax.ShapeDtypeStruct((Bp, OUTW), f32),
        grid=grid,
        in_specs=[pl.BlockSpec((TB, Din), lambda i: (i, 0))]
                 + [full_spec(a) for a in dense]     # constant index -> no re-DMA across steps
                 + [pl.BlockSpec(memory_space=pltpu.MemorySpace.SMEM)],
        out_specs=pl.BlockSpec((TB, OUTW), lambda i: (i, 0)),
        compiler_params=pltpu.CompilerParams(
            dimension_semantics=("parallel",),
            vmem_limit_bytes=32 * 1024 * 1024),
    )(xin, *dense, packed["scal"])
    return out[:B, :O]


# ------------------------------ pure-JAX reference -----------------------------
def reference_forward(x, P):
    O = P["head_w"].shape[0]
    F = P["coef_w"].shape[0]
    fh = P["coef_w"].shape[1]
    B = x.shape[0]
    elu = jax.nn.elu
    h = jax.nn.relu(x @ P["fc_input_w"].T + P["fc_input_b"])
    h = jax.nn.relu(h @ P["fc1_w"].T + P["fc1_b"])
    hiddens = jnp.stack([jax.nn.relu(h @ P["head_w"][i].T + P["head_b"][i])
                         for i in range(O)], axis=1)                   # (B,O,64)
    cm = P["coef_m"]                                                   # (O,O,F)
    cf = [elu(cm[:, :, i:i + 1] * P["coef_w"][i][None, None, :] + P["coef_b"][i])
          for i in range(F)]
    coef_feature = jnp.concatenate(cf, axis=2)
    s = jnp.sum(jnp.exp(elu(coef_feature)), axis=2, keepdims=True)
    cfs = jnp.zeros((O, O, fh), jnp.float32)
    for i in range(F):
        att = jnp.exp(elu(cf[i]))
        cfs = cfs + elu(att * (cf[i] @ P["coef_att_w"][i].T) / s)
    cfs = elu(cfs / F)
    coef_sum = jnp.sum(jnp.exp(elu(cfs)), axis=1)                      # (O,fh)
    atts = []
    for i in range(O):
        nf = cfs[:, i, :]
        p = jnp.exp(elu(nf)) / coef_sum
        atts.append(p * (nf @ P["out_att_w"][i].T))
    coef_att = jnp.concatenate(atts, axis=1)                           # (O, fh*O)
    cfa = jnp.broadcast_to(coef_att[None], (B, O, fh * O))
    hiddens = jnp.concatenate([hiddens, cfa], axis=2)                  # (B,O,NH)
    nodes_hidden = jnp.transpose(hiddens, (0, 2, 1))
    nodes_trans = jnp.transpose(nodes_hidden @ P["nodes_trans_w"].T, (0, 2, 1))
    trans = jax.nn.sigmoid(nodes_trans @ P["trans_gcn_w"].T)
    y = trans @ P["out_map_w"].T + P["out_map_b"]
    a = P["prelu_a"]
    return jnp.where(y > 0, y, a * y)[..., 0]


# ----------------------------------- main --------------------------------------
if __name__ == "__main__":
    B, input_dim, output_dim, feature_nums = 8, 32, 4, 3
    key = jax.random.PRNGKey(0)
    kp, kx = jax.random.split(key)
    P = init_params(kp, input_dim, output_dim, feature_nums)
    x = jax.random.normal(kx, (B, input_dim), jnp.float32)

    packed = prepack_params(P)      # one-time: coef-attention kernel + folding
    out = jax.block_until_ready(net2_forward(x, packed))
    assert out.shape == (B, output_dim)

    ref = reference_forward(x, P)
    if not jnp.allclose(out, ref, rtol=2e-2, atol=2e-2):
        raise AssertionError(
            f"mismatch vs reference, max abs diff = {jnp.max(jnp.abs(out - ref))}")

    print("KERNEL_OK")
</pallas_src>

<mosaic_0001>
module attributes {stable_mosaic.version = 11 : i64} {
  func.func @coef_kernel(%arg0: memref<16x3xf32, #tpu.memory_space<vmem>>, %arg1: memref<3x32xf32, #tpu.memory_space<vmem>>, %arg2: memref<3x32xf32, #tpu.memory_space<vmem>>, %arg3: memref<3x32x32xf32, #tpu.memory_space<vmem>>, %arg4: memref<4x32x32xf32, #tpu.memory_space<vmem>>, %arg5: memref<4x16xf32, #tpu.memory_space<vmem>>, %arg6: memref<4x4x16xf32, #tpu.memory_space<vmem>>, %arg7: memref<4x128xf32, #tpu.memory_space<vmem>>) attributes {dimension_semantics = [], scalar_prefetch = 0 : i64, scratch_operands = 0 : i64, tpu.core_type = #tpu.core_type<tc>} {
    %cst = arith.constant 0.000000e+00 : f32
    %0 = vector.broadcast %cst : f32 to vector<16x1xf32>
    %c0 = arith.constant 0 : index
    %c0_0 = arith.constant 0 : index
    %1 = vector.load %arg0[%c0, %c0_0] : memref<16x3xf32, #tpu.memory_space<vmem>>, vector<16x1xf32>
    %c0_1 = arith.constant 0 : index
    %c0_2 = arith.constant 0 : index
    %2 = vector.load %arg1[%c0_1, %c0_2] : memref<3x32xf32, #tpu.memory_space<vmem>>, vector<1x32xf32>
    %3 = vector.broadcast %1 : vector<16x1xf32> to vector<16x32xf32>
    %4 = vector.broadcast %2 : vector<1x32xf32> to vector<16x32xf32>
    %5 = arith.mulf %3, %4 : vector<16x32xf32>
    %c0_3 = arith.constant 0 : index
    %c0_4 = arith.constant 0 : index
    %6 = vector.load %arg2[%c0_3, %c0_4] : memref<3x32xf32, #tpu.memory_space<vmem>>, vector<1x32xf32>
    %7 = vector.broadcast %6 : vector<1x32xf32> to vector<16x32xf32>
    %8 = arith.addf %5, %7 : vector<16x32xf32>
    %cst_5 = arith.constant 0.000000e+00 : f32
    %9 = vector.broadcast %cst_5 : f32 to vector<16x32xf32>
    %10 = arith.cmpf ogt, %8, %9 : vector<16x32xf32>
    %cst_6 = arith.constant 0.000000e+00 : f32
    %11 = vector.broadcast %cst_6 : f32 to vector<16x32xf32>
    %12 = arith.minimumf %8, %11 : vector<16x32xf32>
    %13 = math.exp %12 : vector<16x32xf32>
    %cst_7 = arith.constant 1.000000e+00 : f32
    %14 = vector.broadcast %cst_7 : f32 to vector<16x32xf32>
    %15 = arith.subf %13, %14 : vector<16x32xf32>
    %16 = arith.select %10, %8, %15 : vector<16x32xi1>, vector<16x32xf32>
    %cst_8 = arith.constant 0.000000e+00 : f32
    %17 = vector.broadcast %cst_8 : f32 to vector<16x32xf32>
    %18 = arith.cmpf ogt, %16, %17 : vector<16x32xf32>
    %cst_9 = arith.constant 0.000000e+00 : f32
    %19 = vector.broadcast %cst_9 : f32 to vector<16x32xf32>
    %20 = arith.minimumf %16, %19 : vector<16x32xf32>
    %21 = math.exp %20 : vector<16x32xf32>
    %cst_10 = arith.constant 1.000000e+00 : f32
    %22 = vector.broadcast %cst_10 : f32 to vector<16x32xf32>
    %23 = arith.subf %21, %22 : vector<16x32xf32>
    %24 = arith.select %18, %16, %23 : vector<16x32xi1>, vector<16x32xf32>
    %25 = math.exp %24 : vector<16x32xf32>
    %cst_11 = arith.constant dense<0.000000e+00> : vector<16xf32>
    %26 = vector.multi_reduction <add>, %25, %cst_11 [1] : vector<16x32xf32> to vector<16xf32>
    %27 = vector.shape_cast %26 : vector<16xf32> to vector<16x1xf32>
    %28 = arith.addf %0, %27 : vector<16x1xf32>
    %c0_12 = arith.constant 0 : index
    %c1 = arith.constant 1 : index
    %29 = vector.load %arg0[%c0_12, %c1] : memref<16x3xf32, #tpu.memory_space<vmem>>, vector<16x1xf32>
    %c1_13 = arith.constant 1 : index
    %c0_14 = arith.constant 0 : index
    %30 = vector.load %arg1[%c1_13, %c0_14] : memref<3x32xf32, #tpu.memory_space<vmem>>, vector<1x32xf32>
    %31 = vector.broadcast %29 : vector<16x1xf32> to vector<16x32xf32>
    %32 = vector.broadcast %30 : vector<1x32xf32> to vector<16x32xf32>
    %33 = arith.mulf %31, %32 : vector<16x32xf32>
    %c1_15 = arith.constant 1 : index
    %c0_16 = arith.constant 0 : index
    %34 = vector.load %arg2[%c1_15, %c0_16] : memref<3x32xf32, #tpu.memory_space<vmem>>, vector<1x32xf32>
    %35 = vector.broadcast %34 : vector<1x32xf32> to vector<16x32xf32>
    %36 = arith.addf %33, %35 : vector<16x32xf32>
    %cst_17 = arith.constant 0.000000e+00 : f32
    %37 = vector.broadcast %cst_17 : f32 to vector<16x32xf32>
    %38 = arith.cmpf ogt, %36, %37 : vector<16x32xf32>
    %cst_18 = arith.constant 0.000000e+00 : f32
    %39 = vector.broadcast %cst_18 : f32 to vector<16x32xf32>
    %40 = arith.minimumf %36, %39 : vector<16x32xf32>
    %41 = math.exp %40 : vector<16x32xf32>
    %cst_19 = arith.constant 1.000000e+00 : f32
    %42 = vector.broadcast %cst_19 : f32 to vector<16x32xf32>
    %43 = arith.subf %41, %42 : vector<16x32xf32>
    %44 = arith.select %38, %36, %43 : vector<16x32xi1>, vector<16x32xf32>
    %cst_20 = arith.constant 0.000000e+00 : f32
    %45 = vector.broadcast %cst_20 : f32 to vector<16x32xf32>
    %46 = arith.cmpf ogt, %44, %45 : vector<16x32xf32>
    %cst_21 = arith.constant 0.000000e+00 : f32
    %47 = vector.broadcast %cst_21 : f32 to vector<16x32xf32>
    %48 = arith.minimumf %44, %47 : vector<16x32xf32>
    %49 = math.exp %48 : vector<16x32xf32>
    %cst_22 = arith.constant 1.000000e+00 : f32
    %50 = vector.broadcast %cst_22 : f32 to vector<16x32xf32>
    %51 = arith.subf %49, %50 : vector<16x32xf32>
    %52 = arith.select %46, %44, %51 : vector<16x32xi1>, vector<16x32xf32>
    %53 = math.exp %52 : vector<16x32xf32>
    %cst_23 = arith.constant dense<0.000000e+00> : vector<16xf32>
    %54 = vector.multi_reduction <add>, %53, %cst_23 [1] : vector<16x32xf32> to vector<16xf32>
    %55 = vector.shape_cast %54 : vector<16xf32> to vector<16x1xf32>
    %56 = arith.addf %28, %55 : vector<16x1xf32>
    %c0_24 = arith.constant 0 : index
    %c2 = arith.constant 2 : index
    %57 = vector.load %arg0[%c0_24, %c2] : memref<16x3xf32, #tpu.memory_space<vmem>>, vector<16x1xf32>
    %c2_25 = arith.constant 2 : index
    %c0_26 = arith.constant 0 : index
    %58 = vector.load %arg1[%c2_25, %c0_26] : memref<3x32xf32, #tpu.memory_space<vmem>>, vector<1x32xf32>
    %59 = vector.broadcast %57 : vector<16x1xf32> to vector<16x32xf32>
    %60 = vector.broadcast %58 : vector<1x32xf32> to vector<16x32xf32>
    %61 = arith.mulf %59, %60 : vector<16x32xf32>
    %c2_27 = arith.constant 2 : index
    %c0_28 = arith.constant 0 : index
    %62 = vector.load %arg2[%c2_27, %c0_28] : memref<3x32xf32, #tpu.memory_space<vmem>>, vector<1x32xf32>
    %63 = vector.broadcast %62 : vector<1x32xf32> to vector<16x32xf32>
    %64 = arith.addf %61, %63 : vector<16x32xf32>
    %cst_29 = arith.constant 0.000000e+00 : f32
    %65 = vector.broadcast %cst_29 : f32 to vector<16x32xf32>
    %66 = arith.cmpf ogt, %64, %65 : vector<16x32xf32>
    %cst_30 = arith.constant 0.000000e+00 : f32
    %67 = vector.broadcast %cst_30 : f32 to vector<16x32xf32>
    %68 = arith.minimumf %64, %67 : vector<16x32xf32>
    %69 = math.exp %68 : vector<16x32xf32>
    %cst_31 = arith.constant 1.000000e+00 : f32
    %70 = vector.broadcast %cst_31 : f32 to vector<16x32xf32>
    %71 = arith.subf %69, %70 : vector<16x32xf32>
    %72 = arith.select %66, %64, %71 : vector<16x32xi1>, vector<16x32xf32>
    %cst_32 = arith.constant 0.000000e+00 : f32
    %73 = vector.broadcast %cst_32 : f32 to vector<16x32xf32>
    %74 = arith.cmpf ogt, %72, %73 : vector<16x32xf32>
    %cst_33 = arith.constant 0.000000e+00 : f32
    %75 = vector.broadcast %cst_33 : f32 to vector<16x32xf32>
    %76 = arith.minimumf %72, %75 : vector<16x32xf32>
    %77 = math.exp %76 : vector<16x32xf32>
    %cst_34 = arith.constant 1.000000e+00 : f32
    %78 = vector.broadcast %cst_34 : f32 to vector<16x32xf32>
    %79 = arith.subf %77, %78 : vector<16x32xf32>
    %80 = arith.select %74, %72, %79 : vector<16x32xi1>, vector<16x32xf32>
    %81 = math.exp %80 : vector<16x32xf32>
    %cst_35 = arith.constant dense<0.000000e+00> : vector<16xf32>
    %82 = vector.multi_reduction <add>, %81, %cst_35 [1] : vector<16x32xf32> to vector<16xf32>
    %83 = vector.shape_cast %82 : vector<16xf32> to vector<16x1xf32>
    %84 = arith.addf %56, %83 : vector<16x1xf32>
    %cst_36 = arith.constant 0.000000e+00 : f32
    %85 = vector.broadcast %cst_36 : f32 to vector<16x32xf32>
    %c0_37 = arith.constant 0 : index
    %c0_38 = arith.constant 0 : index
    %c0_39 = arith.constant 0 : index
    %86 = vector.load %arg3[%c0_37, %c0_38, %c0_39] : memref<3x32x32xf32, #tpu.memory_space<vmem>>, vector<1x32x32xf32>
    %87 = vector.shape_cast %86 : vector<1x32x32xf32> to vector<32x32xf32>
    %cst_40 = arith.constant dense<0.000000e+00> : vector<16x32xf32>
    %88 = tpu.matmul %16, %87, %cst_40 {dimension_numbers = #tpu.dot_dimension_numbers<[1], [0], [0], [1], [0, 0, 1, 1], [], []>} : vector<16x32xf32>, vector<32x32xf32>, vector<16x32xf32> -> vector<16x32xf32>
    %cst_41 = arith.constant 0.000000e+00 : f32
    %89 = vector.broadcast %cst_41 : f32 to vector<16x32xf32>
    %90 = arith.cmpf ogt, %16, %89 : vector<16x32xf32>
    %cst_42 = arith.constant 0.000000e+00 : f32
    %91 = vector.broadcast %cst_42 : f32 to vector<16x32xf32>
    %92 = arith.minimumf %16, %91 : vector<16x32xf32>
    %93 = math.exp %92 : vector<16x32xf32>
    %cst_43 = arith.constant 1.000000e+00 : f32
    %94 = vector.broadcast %cst_43 : f32 to vector<16x32xf32>
    %95 = arith.subf %93, %94 : vector<16x32xf32>
    %96 = arith.select %90, %16, %95 : vector<16x32xi1>, vector<16x32xf32>
    %97 = math.exp %96 : vector<16x32xf32>
    %98 = arith.mulf %97, %88 : vector<16x32xf32>
    %99 = vector.broadcast %84 : vector<16x1xf32> to vector<16x32xf32>
    %100 = arith.divf %98, %99 : vector<16x32xf32>
    %cst_44 = arith.constant 0.000000e+00 : f32
    %101 = vector.broadcast %cst_44 : f32 to vector<16x32xf32>
    %102 = arith.cmpf ogt, %100, %101 : vector<16x32xf32>
    %cst_45 = arith.constant 0.000000e+00 : f32
    %103 = vector.broadcast %cst_45 : f32 to vector<16x32xf32>
    %104 = arith.minimumf %100, %103 : vector<16x32xf32>
    %105 = math.exp %104 : vector<16x32xf32>
    %cst_46 = arith.constant 1.000000e+00 : f32
    %106 = vector.broadcast %cst_46 : f32 to vector<16x32xf32>
    %107 = arith.subf %105, %106 : vector<16x32xf32>
    %108 = arith.select %102, %100, %107 : vector<16x32xi1>, vector<16x32xf32>
    %109 = arith.addf %85, %108 : vector<16x32xf32>
    %c1_47 = arith.constant 1 : index
    %c0_48 = arith.constant 0 : index
    %c0_49 = arith.constant 0 : index
    %110 = vector.load %arg3[%c1_47, %c0_48, %c0_49] : memref<3x32x32xf32, #tpu.memory_space<vmem>>, vector<1x32x32xf32>
    %111 = vector.shape_cast %110 : vector<1x32x32xf32> to vector<32x32xf32>
    %cst_50 = arith.constant dense<0.000000e+00> : vector<16x32xf32>
    %112 = tpu.matmul %44, %111, %cst_50 {dimension_numbers = #tpu.dot_dimension_numbers<[1], [0], [0], [1], [0, 0, 1, 1], [], []>} : vector<16x32xf32>, vector<32x32xf32>, vector<16x32xf32> -> vector<16x32xf32>
    %cst_51 = arith.constant 0.000000e+00 : f32
    %113 = vector.broadcast %cst_51 : f32 to vector<16x32xf32>
    %114 = arith.cmpf ogt, %44, %113 : vector<16x32xf32>
    %cst_52 = arith.constant 0.000000e+00 : f32
    %115 = vector.broadcast %cst_52 : f32 to vector<16x32xf32>
    %116 = arith.minimumf %44, %115 : vector<16x32xf32>
    %117 = math.exp %116 : vector<16x32xf32>
    %cst_53 = arith.constant 1.000000e+00 : f32
    %118 = vector.broadcast %cst_53 : f32 to vector<16x32xf32>
    %119 = arith.subf %117, %118 : vector<16x32xf32>
    %120 = arith.select %114, %44, %119 : vector<16x32xi1>, vector<16x32xf32>
    %121 = math.exp %120 : vector<16x32xf32>
    %122 = arith.mulf %121, %112 : vector<16x32xf32>
    %123 = vector.broadcast %84 : vector<16x1xf32> to vector<16x32xf32>
    %124 = arith.divf %122, %123 : vector<16x32xf32>
    %cst_54 = arith.constant 0.000000e+00 : f32
    %125 = vector.broadcast %cst_54 : f32 to vector<16x32xf32>
    %126 = arith.cmpf ogt, %124, %125 : vector<16x32xf32>
    %cst_55 = arith.constant 0.000000e+00 : f32
    %127 = vector.broadcast %cst_55 : f32 to vector<16x32xf32>
    %128 = arith.minimumf %124, %127 : vector<16x32xf32>
    %129 = math.exp %128 : vector<16x32xf32>
    %cst_56 = arith.constant 1.000000e+00 : f32
    %130 = vector.broadcast %cst_56 : f32 to vector<16x32xf32>
    %131 = arith.subf %129, %130 : vector<16x32xf32>
    %132 = arith.select %126, %124, %131 : vector<16x32xi1>, vector<16x32xf32>
    %133 = arith.addf %109, %132 : vector<16x32xf32>
    %c2_57 = arith.constant 2 : index
    %c0_58 = arith.constant 0 : index
    %c0_59 = arith.constant 0 : index
    %134 = vector.load %arg3[%c2_57, %c0_58, %c0_59] : memref<3x32x32xf32, #tpu.memory_space<vmem>>, vector<1x32x32xf32>
    %135 = vector.shape_cast %134 : vector<1x32x32xf32> to vector<32x32xf32>
    %cst_60 = arith.constant dense<0.000000e+00> : vector<16x32xf32>
    %136 = tpu.matmul %72, %135, %cst_60 {dimension_numbers = #tpu.dot_dimension_numbers<[1], [0], [0], [1], [0, 0, 1, 1], [], []>} : vector<16x32xf32>, vector<32x32xf32>, vector<16x32xf32> -> vector<16x32xf32>
    %cst_61 = arith.constant 0.000000e+00 : f32
    %137 = vector.broadcast %cst_61 : f32 to vector<16x32xf32>
    %138 = arith.cmpf ogt, %72, %137 : vector<16x32xf32>
    %cst_62 = arith.constant 0.000000e+00 : f32
    %139 = vector.broadcast %cst_62 : f32 to vector<16x32xf32>
    %140 = arith.minimumf %72, %139 : vector<16x32xf32>
    %141 = math.exp %140 : vector<16x32xf32>
    %cst_63 = arith.constant 1.000000e+00 : f32
    %142 = vector.broadcast %cst_63 : f32 to vector<16x32xf32>
    %143 = arith.subf %141, %142 : vector<16x32xf32>
    %144 = arith.select %138, %72, %143 : vector<16x32xi1>, vector<16x32xf32>
    %145 = math.exp %144 : vector<16x32xf32>
    %146 = arith.mulf %145, %136 : vector<16x32xf32>
    %147 = vector.broadcast %84 : vector<16x1xf32> to vector<16x32xf32>
    %148 = arith.divf %146, %147 : vector<16x32xf32>
    %cst_64 = arith.constant 0.000000e+00 : f32
    %149 = vector.broadcast %cst_64 : f32 to vector<16x32xf32>
    %150 = arith.cmpf ogt, %148, %149 : vector<16x32xf32>
    %cst_65 = arith.constant 0.000000e+00 : f32
    %151 = vector.broadcast %cst_65 : f32 to vector<16x32xf32>
    %152 = arith.minimumf %148, %151 : vector<16x32xf32>
    %153 = math.exp %152 : vector<16x32xf32>
    %cst_66 = arith.constant 1.000000e+00 : f32
    %154 = vector.broadcast %cst_66 : f32 to vector<16x32xf32>
    %155 = arith.subf %153, %154 : vector<16x32xf32>
    %156 = arith.select %150, %148, %155 : vector<16x32xi1>, vector<16x32xf32>
    %157 = arith.addf %133, %156 : vector<16x32xf32>
    %cst_67 = arith.constant 3.000000e+00 : f32
    %158 = vector.broadcast %cst_67 : f32 to vector<16x32xf32>
    %159 = arith.divf %157, %158 : vector<16x32xf32>
    %cst_68 = arith.constant 0.000000e+00 : f32
    %160 = vector.broadcast %cst_68 : f32 to vector<16x32xf32>
    %161 = arith.cmpf ogt, %159, %160 : vector<16x32xf32>
    %cst_69 = arith.constant 0.000000e+00 : f32
    %162 = vector.broadcast %cst_69 : f32 to vector<16x32xf32>
    %163 = arith.minimumf %159, %162 : vector<16x32xf32>
    %164 = math.exp %163 : vector<16x32xf32>
    %cst_70 = arith.constant 1.000000e+00 : f32
    %165 = vector.broadcast %cst_70 : f32 to vector<16x32xf32>
    %166 = arith.subf %164, %165 : vector<16x32xf32>
    %167 = arith.select %161, %159, %166 : vector<16x32xi1>, vector<16x32xf32>
    %c0_71 = arith.constant 0 : index
    %c0_72 = arith.constant 0 : index
    %168 = vector.load %arg5[%c0_71, %c0_72] : memref<4x16xf32, #tpu.memory_space<vmem>>, vector<4x16xf32>
    %cst_73 = arith.constant 0.000000e+00 : f32
    %169 = vector.broadcast %cst_73 : f32 to vector<16x32xf32>
    %170 = arith.cmpf ogt, %167, %169 : vector<16x32xf32>
    %cst_74 = arith.constant 0.000000e+00 : f32
    %171 = vector.broadcast %cst_74 : f32 to vector<16x32xf32>
    %172 = arith.minimumf %167, %171 : vector<16x32xf32>
    %173 = math.exp %172 : vector<16x32xf32>
    %cst_75 = arith.constant 1.000000e+00 : f32
    %174 = vector.broadcast %cst_75 : f32 to vector<16x32xf32>
    %175 = arith.subf %173, %174 : vector<16x32xf32>
    %176 = arith.select %170, %167, %175 : vector<16x32xi1>, vector<16x32xf32>
    %177 = math.exp %176 : vector<16x32xf32>
    %cst_76 = arith.constant dense<0.000000e+00> : vector<4x32xf32>
    %178 = tpu.matmul %168, %177, %cst_76 {dimension_numbers = #tpu.dot_dimension_numbers<[1], [0], [0], [1], [0, 0, 1, 1], [], []>} : vector<4x16xf32>, vector<16x32xf32>, vector<4x32xf32> -> vector<4x32xf32>
    %c0_77 = arith.constant 0 : index
    %c0_78 = arith.constant 0 : index
    %c0_79 = arith.constant 0 : index
    %179 = vector.load %arg6[%c0_77, %c0_78, %c0_79] : memref<4x4x16xf32, #tpu.memory_space<vmem>>, vector<1x4x16xf32>
    %180 = vector.shape_cast %179 : vector<1x4x16xf32> to vector<4x16xf32>
    %cst_80 = arith.constant dense<0.000000e+00> : vector<4x32xf32>
    %181 = tpu.matmul %180, %167, %cst_80 {dimension_numbers = #tpu.dot_dimension_numbers<[1], [0], [0], [1], [0, 0, 1, 1], [], []>} : vector<4x16xf32>, vector<16x32xf32>, vector<4x32xf32> -> vector<4x32xf32>
    %cst_81 = arith.constant 0.000000e+00 : f32
    %182 = vector.broadcast %cst_81 : f32 to vector<4x32xf32>
    %183 = arith.cmpf ogt, %181, %182 : vector<4x32xf32>
    %cst_82 = arith.constant 0.000000e+00 : f32
    %184 = vector.broadcast %cst_82 : f32 to vector<4x32xf32>
    %185 = arith.minimumf %181, %184 : vector<4x32xf32>
    %186 = math.exp %185 : vector<4x32xf32>
    %cst_83 = arith.constant 1.000000e+00 : f32
    %187 = vector.broadcast %cst_83 : f32 to vector<4x32xf32>
    %188 = arith.subf %186, %187 : vector<4x32xf32>
    %189 = arith.select %183, %181, %188 : vector<4x32xi1>, vector<4x32xf32>
    %190 = math.exp %189 : vector<4x32xf32>
    %191 = arith.divf %190, %178 : vector<4x32xf32>
    %c0_84 = arith.constant 0 : index
    %c0_85 = arith.constant 0 : index
    %c0_86 = arith.constant 0 : index
    %192 = vector.load %arg4[%c0_84, %c0_85, %c0_86] : memref<4x32x32xf32, #tpu.memory_space<vmem>>, vector<1x32x32xf32>
    %193 = vector.shape_cast %192 : vector<1x32x32xf32> to vector<32x32xf32>
    %cst_87 = arith.constant dense<0.000000e+00> : vector<4x32xf32>
    %194 = tpu.matmul %181, %193, %cst_87 {dimension_numbers = #tpu.dot_dimension_numbers<[1], [0], [0], [1], [0, 0, 1, 1], [], []>} : vector<4x32xf32>, vector<32x32xf32>, vector<4x32xf32> -> vector<4x32xf32>
    %195 = arith.mulf %191, %194 : vector<4x32xf32>
    %c1_88 = arith.constant 1 : index
    %c0_89 = arith.constant 0 : index
    %c0_90 = arith.constant 0 : index
    %196 = vector.load %arg6[%c1_88, %c0_89, %c0_90] : memref<4x4x16xf32, #tpu.memory_space<vmem>>, vector<1x4x16xf32>
    %197 = vector.shape_cast %196 : vector<1x4x16xf32> to vector<4x16xf32>
    %cst_91 = arith.constant dense<0.000000e+00> : vector<4x32xf32>
    %198 = tpu.matmul %197, %167, %cst_91 {dimension_numbers = #tpu.dot_dimension_numbers<[1], [0], [0], [1], [0, 0, 1, 1], [], []>} : vector<4x16xf32>, vector<16x32xf32>, vector<4x32xf32> -> vector<4x32xf32>
    %cst_92 = arith.constant 0.000000e+00 : f32
    %199 = vector.broadcast %cst_92 : f32 to vector<4x32xf32>
    %200 = arith.cmpf ogt, %198, %199 : vector<4x32xf32>
    %cst_93 = arith.constant 0.000000e+00 : f32
    %201 = vector.broadcast %cst_93 : f32 to vector<4x32xf32>
    %202 = arith.minimumf %198, %201 : vector<4x32xf32>
    %203 = math.exp %202 : vector<4x32xf32>
    %cst_94 = arith.constant 1.000000e+00 : f32
    %204 = vector.broadcast %cst_94 : f32 to vector<4x32xf32>
    %205 = arith.subf %203, %204 : vector<4x32xf32>
    %206 = arith.select %200, %198, %205 : vector<4x32xi1>, vector<4x32xf32>
    %207 = math.exp %206 : vector<4x32xf32>
    %208 = arith.divf %207, %178 : vector<4x32xf32>
    %c1_95 = arith.constant 1 : index
    %c0_96 = arith.constant 0 : index
    %c0_97 = arith.constant 0 : index
    %209 = vector.load %arg4[%c1_95, %c0_96, %c0_97] : memref<4x32x32xf32, #tpu.memory_space<vmem>>, vector<1x32x32xf32>
    %210 = vector.shape_cast %209 : vector<1x32x32xf32> to vector<32x32xf32>
    %cst_98 = arith.constant dense<0.000000e+00> : vector<4x32xf32>
    %211 = tpu.matmul %198, %210, %cst_98 {dimension_numbers = #tpu.dot_dimension_numbers<[1], [0], [0], [1], [0, 0, 1, 1], [], []>} : vector<4x32xf32>, vector<32x32xf32>, vector<4x32xf32> -> vector<4x32xf32>
    %212 = arith.mulf %208, %211 : vector<4x32xf32>
    %c2_99 = arith.constant 2 : index
    %c0_100 = arith.constant 0 : index
    %c0_101 = arith.constant 0 : index
    %213 = vector.load %arg6[%c2_99, %c0_100, %c0_101] : memref<4x4x16xf32, #tpu.memory_space<vmem>>, vector<1x4x16xf32>
    %214 = vector.shape_cast %213 : vector<1x4x16xf32> to vector<4x16xf32>
    %cst_102 = arith.constant dense<0.000000e+00> : vector<4x32xf32>
    %215 = tpu.matmul %214, %167, %cst_102 {dimension_numbers = #tpu.dot_dimension_numbers<[1], [0], [0], [1], [0, 0, 1, 1], [], []>} : vector<4x16xf32>, vector<16x32xf32>, vector<4x32xf32> -> vector<4x32xf32>
    %cst_103 = arith.constant 0.000000e+00 : f32
    %216 = vector.broadcast %cst_103 : f32 to vector<4x32xf32>
    %217 = arith.cmpf ogt, %215, %216 : vector<4x32xf32>
    %cst_104 = arith.constant 0.000000e+00 : f32
    %218 = vector.broadcast %cst_104 : f32 to vector<4x32xf32>
    %219 = arith.minimumf %215, %218 : vector<4x32xf32>
    %220 = math.exp %219 : vector<4x32xf32>
    %cst_105 = arith.constant 1.000000e+00 : f32
    %221 = vector.broadcast %cst_105 : f32 to vector<4x32xf32>
    %222 = arith.subf %220, %221 : vector<4x32xf32>
    %223 = arith.select %217, %215, %222 : vector<4x32xi1>, vector<4x32xf32>
    %224 = math.exp %223 : vector<4x32xf32>
    %225 = arith.divf %224, %178 : vector<4x32xf32>
    %c2_106 = arith.constant 2 : index
    %c0_107 = arith.constant 0 : index
    %c0_108 = arith.constant 0 : index
    %226 = vector.load %arg4[%c2_106, %c0_107, %c0_108] : memref<4x32x32xf32, #tpu.memory_space<vmem>>, vector<1x32x32xf32>
    %227 = vector.shape_cast %226 : vector<1x32x32xf32> to vector<32x32xf32>
    %cst_109 = arith.constant dense<0.000000e+00> : vector<4x32xf32>
    %228 = tpu.matmul %215, %227, %cst_109 {dimension_numbers = #tpu.dot_dimension_numbers<[1], [0], [0], [1], [0, 0, 1, 1], [], []>} : vector<4x32xf32>, vector<32x32xf32>, vector<4x32xf32> -> vector<4x32xf32>
    %229 = arith.mulf %225, %228 : vector<4x32xf32>
    %c3 = arith.constant 3 : index
    %c0_110 = arith.constant 0 : index
    %c0_111 = arith.constant 0 : index
    %230 = vector.load %arg6[%c3, %c0_110, %c0_111] : memref<4x4x16xf32, #tpu.memory_space<vmem>>, vector<1x4x16xf32>
    %231 = vector.shape_cast %230 : vector<1x4x16xf32> to vector<4x16xf32>
    %cst_112 = arith.constant dense<0.000000e+00> : vector<4x32xf32>
    %232 = tpu.matmul %231, %167, %cst_112 {dimension_numbers = #tpu.dot_dimension_numbers<[1], [0], [0], [1], [0, 0, 1, 1], [], []>} : vector<4x16xf32>, vector<16x32xf32>, vector<4x32xf32> -> vector<4x32xf32>
    %cst_113 = arith.constant 0.000000e+00 : f32
    %233 = vector.broadcast %cst_113 : f32 to vector<4x32xf32>
    %234 = arith.cmpf ogt, %232, %233 : vector<4x32xf32>
    %cst_114 = arith.constant 0.000000e+00 : f32
    %235 = vector.broadcast %cst_114 : f32 to vector<4x32xf32>
    %236 = arith.minimumf %232, %235 : vector<4x32xf32>
    %237 = math.exp %236 : vector<4x32xf32>
    %cst_115 = arith.constant 1.000000e+00 : f32
    %238 = vector.broadcast %cst_115 : f32 to vector<4x32xf32>
    %239 = arith.subf %237, %238 : vector<4x32xf32>
    %240 = arith.select %234, %232, %239 : vector<4x32xi1>, vector<4x32xf32>
    %241 = math.exp %240 : vector<4x32xf32>
    %242 = arith.divf %241, %178 : vector<4x32xf32>
    %c3_116 = arith.constant 3 : index
    %c0_117 = arith.constant 0 : index
    %c0_118 = arith.constant 0 : index
    %243 = vector.load %arg4[%c3_116, %c0_117, %c0_118] : memref<4x32x32xf32, #tpu.memory_space<vmem>>, vector<1x32x32xf32>
    %244 = vector.shape_cast %243 : vector<1x32x32xf32> to vector<32x32xf32>
    %cst_119 = arith.constant dense<0.000000e+00> : vector<4x32xf32>
    %245 = tpu.matmul %232, %244, %cst_119 {dimension_numbers = #tpu.dot_dimension_numbers<[1], [0], [0], [1], [0, 0, 1, 1], [], []>} : vector<4x32xf32>, vector<32x32xf32>, vector<4x32xf32> -> vector<4x32xf32>
    %246 = arith.mulf %242, %245 : vector<4x32xf32>
    %247 = tpu.concatenate %195, %212, %229, %246 in 1 : vector<4x32xf32>, vector<4x32xf32>, vector<4x32xf32>, vector<4x32xf32> -> vector<4x128xf32>
    %c0_120 = arith.constant 0 : index
    %c0_121 = arith.constant 0 : index
    %248 = vector.load %arg7[%c0_120, %c0_121] : memref<4x128xf32, #tpu.memory_space<vmem>>, vector<4x128xf32>
    tpu.vector_store %arg7[%c0_120, %c0_121], %247 {strides = array<i32>} : memref<4x128xf32, #tpu.memory_space<vmem>>, vector<4x128xf32>,
    return
  }
}

</mosaic_0001>

<llo_original>
// kernel: tpu_custom_call.1
$region0: #{tpu_custom_call.1}
  #allocation0 [shape = 'u32[]', space=smem, size = 0x4, offset = 0x4, fixed_abs, tag = 'smem constant byte address 0x4 - core index']
  #allocation1 [shape = 'u32[144,128]{1,0:T(1,128)}', space=vmem, size = 0x12000, scoped, tag = 'internal scratch']
  %s0 = inlined_call_operand.vmem [shape: f32[16,3], index: 0, kind: input, shape index: {}]
  %s1 = inlined_call_operand.vmem [shape: f32[3,32], index: 1, kind: input, shape index: {}]
  %s2 = inlined_call_operand.vmem [shape: f32[3,32], index: 2, kind: input, shape index: {}]
  %s3 = inlined_call_operand.hbm [shape: f32[3,32,32], index: 3, kind: input, shape index: {}]
  %s4 = inlined_call_operand.hbm [shape: f32[4,32,32], index: 4, kind: input, shape index: {}]
  %s5 = inlined_call_operand.vmem [shape: f32[4,16], index: 5, kind: input, shape index: {}]
  %s6 = inlined_call_operand.vmem [shape: f32[4,4,16], index: 6, kind: input, shape index: {}]
  %s7 = inlined_call_operand.hbm [shape: f32[4,128], index: 7, kind: output, shape index: {}]
  %s8 = sld [smem:[#allocation0]]
  $region46: #{tpu_custom_call.1} parent=0
    _
  %s10 = ssub.s32 1, %s8
  %s11 = scalar_select 0, %s10, %s8
  $region1: #{tpu_custom_call.1} parent=0
    #allocation2 [shape = 'u8[49152]{0}', space=vmem, size = 0xc000, scoped, tag = 'input window, operand 3, single buffered']
    #allocation3 [shape = 's32[1]{0}', space=sflag, size = 0x4, scoped, tag = 'scoped memory for tpu_custom_call.1']
    #allocation4 [shape = 's32[1]{0}', space=sflag, size = 0x4, scoped, tag = 'scoped memory for tpu_custom_call.1']
    #allocation5 [shape = 'u8[65536]{0}', space=vmem, size = 0x10000, scoped, tag = 'input window, operand 4, single buffered']
    #allocation6 [shape = 's32[1]{0}', space=sflag, size = 0x4, scoped, tag = 'scoped memory for tpu_custom_call.1']
    #allocation7 [shape = 'u8[2048]{0}', space=vmem, size = 0x800, scoped, tag = 'output window, operand 0, single buffered']
    %12 = vsyncpa [#allocation3], 0
    %13 = vsyncpa [#allocation6], 0
    %14 = vsyncpa [#allocation4], 0
    // Predicated region
    $region2: #{tpu_custom_call.1} parent=1 // pred_check
      _
    $region3: #{tpu_custom_call.1} parent=1 // pred_check_branch
      %16 = sbr.rel (0) target = $region5
    $region4: #{tpu_custom_call.1} parent=1 // pred_region
      _
    $region5: #{tpu_custom_call.1} parent=1 // pred_fallthru
      _
    // Predicated region
    $region6: #{tpu_custom_call.1} parent=1 // pred_check
      _
    $region7: #{tpu_custom_call.1} parent=1 // pred_check_branch
      %18 = sbr.rel (0) target = $region9
    $region8: #{tpu_custom_call.1} parent=1 // pred_region
      _
    $region9: #{tpu_custom_call.1} parent=1 // pred_fallthru
      _
    // Predicated region
    $region10: #{tpu_custom_call.1} parent=1 // pred_check
      _
    $region11: #{tpu_custom_call.1} parent=1 // pred_check_branch
      %20 = sbr.rel (0) target = $region13
    $region12: #{tpu_custom_call.1} parent=1 // pred_region
      _
    $region13: #{tpu_custom_call.1} parent=1 // pred_fallthru
      _
    // Predicated region
    $region14: #{tpu_custom_call.1} parent=1 // pred_check
      _
    $region15: #{tpu_custom_call.1} parent=1 // pred_check_branch
      %22 = sbr.rel (0) target = $region17
    $region16: #{tpu_custom_call.1} parent=1 // pred_region
      %s24 = ssub.s32 1536, 1536
      %25 = vsyncadd [#allocation3], %s24
      %s26 = sshll.u32 [#allocation2], 4
      %s27 = int_to_ptr.vmem [resolvable:$true] %s26
      %32 = dma.hbm_to_vmem [thread:$0]  %s3, 1536, %s27, [#allocation3], 128, 128, 8
    $region17: #{tpu_custom_call.1} parent=1 // pred_fallthru
      _
    // Predicated region
    $region18: #{tpu_custom_call.1} parent=1 // pred_check
      _
    $region19: #{tpu_custom_call.1} parent=1 // pred_check_branch
      %34 = sbr.rel (0) target = $region21
    $region20: #{tpu_custom_call.1} parent=1 // pred_region
      %s36 = ssub.s32 2048, 2048
      %37 = vsyncadd [#allocation6], %s36
      %s38 = sshll.u32 [#allocation5], 4
      %s39 = int_to_ptr.vmem [resolvable:$true] %s38
      %44 = dma.hbm_to_vmem [thread:$0]  %s4, 2048, %s39, [#allocation6], 128, 128, 8
    $region21: #{tpu_custom_call.1} parent=1 // pred_fallthru
      _
    // Predicated region
    $region22: #{tpu_custom_call.1} parent=1 // pred_check
      _
    $region23: #{tpu_custom_call.1} parent=1 // pred_check_branch
      %46 = sbr.rel (0) target = $region25
    $region24: #{tpu_custom_call.1} parent=1 // pred_region
      _
    $region25: #{tpu_custom_call.1} parent=1 // pred_fallthru
      _
    // Predicated region
    $region26: #{tpu_custom_call.1} parent=1 // pred_check
      _
    $region27: #{tpu_custom_call.1} parent=1 // pred_check_branch
      %48 = sbr.rel (0) target = $region29
    $region28: #{tpu_custom_call.1} parent=1 // pred_region
      _
    $region29: #{tpu_custom_call.1} parent=1 // pred_fallthru
      _
    // Predicated region
    $region30: #{tpu_custom_call.1} parent=1 // pred_check
      _
    $region31: #{tpu_custom_call.1} parent=1 // pred_check_branch
      %50 = sbr.rel (0) target = $region33
    $region32: #{tpu_custom_call.1} parent=1 // pred_region
      %51 = dma.done [#allocation3], 1536
    $region33: #{tpu_custom_call.1} parent=1 // pred_fallthru
      _
    // Predicated region
    $region34: #{tpu_custom_call.1} parent=1 // pred_check
      _
    $region35: #{tpu_custom_call.1} parent=1 // pred_check_branch
      %53 = sbr.rel (0) target = $region37
    $region36: #{tpu_custom_call.1} parent=1 // pred_region
      %54 = dma.done [#allocation6], 2048
    $region37: #{tpu_custom_call.1} parent=1 // pred_fallthru
      _
    %v55 = vld [vmem:[%s0] sm:$0xff]
    %v56 = vld [vmem:[%s0 + $0x8] sm:$0xff]
    %v57 = vld [vmem:[%s1] sm:$0x1]
    %59 = vset.pattern.permute.xlu0 0
    %60 = vperm.xlu0 %59, %v55
    %v61 = vpop.permute.xlu0 %60
    %64 = vset.pattern.permute.xlu0 0
    %65 = vperm.xlu0 %64, %v56
    %v66 = vpop.permute.xlu0 %65
    %v68 = vlaneseq
    %v69 = vshrl.u32 %v68, 7
    %v70 = vsub.s32 0, %v69
    %v71 = vrot.slane %v57, %v70
    %v72 = vmul.f32 %v61, %v71
    %v73 = vmul.f32 %v66, %v71
    %v74 = vld [vmem:[%s2] sm:$0x1]
    %v75 = vlaneseq
    %v76 = vshrl.u32 %v75, 7
    %v77 = vsub.s32 0, %v76
    %v78 = vrot.slane %v74, %v77
    %v79 = vadd.f32 %v72, %v78
    %v80 = vadd.f32 %v73, %v78
    %vm81 = vcmp.gt.f32.partialorder %v79, 0.0
    %vm82 = vcmp.gt.f32.partialorder %v80, 0.0
    %v83 = vmin.f32 %v79, 0.0
    %v84 = vmin.f32 %v80, 0.0
    %v85 = vmul.f32 %v83, 1.442695
    %v86 = vpow.pop %v85
    %v87 = vmul.f32 %v84, 1.442695
    %v88 = vpow.pop %v87
    %v89 = vsub.f32 %v86, 1.0
    %v90 = vsub.f32 %v88, 1.0
    %v91 = vsel %vm81, %v79, %v89
    %v92 = vsel %vm82, %v80, %v90
    %vm93 = vcmp.gt.f32.partialorder %v91, 0.0
    %vm94 = vcmp.gt.f32.partialorder %v92, 0.0
    %v95 = vmin.f32 %v91, 0.0
    %v96 = vmin.f32 %v92, 0.0
    %v97 = vmul.f32 %v95, 1.442695
    %v98 = vpow.pop %v97
    %v99 = vmul.f32 %v96, 1.442695
    %v100 = vpow.pop %v99
    %v101 = vsub.f32 %v98, 1.0
    %v102 = vsub.f32 %v100, 1.0
    %v103 = vsel %vm93, %v91, %v101
    %v104 = vsel %vm94, %v92, %v102
    %v105 = vmul.f32 %v103, 1.442695
    %v106 = vpow.pop %v105
    %v107 = vmul.f32 %v104, 1.442695
    %v108 = vpow.pop %v107
    %vm109 = vcmask 261120
    %v110 = vsel %vm109, %v106, 0.0
    %111 = vadd.xlane.f32.xlu0 %v110
    %v112 = vpop.xlane.xlu0 %111
    %v113 = vsel %vm109, %v108, 0.0
    %114 = vadd.xlane.f32.xlu0 %v113
    %v115 = vpop.xlane.xlu0 %114
    %v116 = vadd.f32 %v112, 0.0
    %v117 = vadd.f32 %v115, 0.0
    %v118 = vld [vmem:[%s1 + $0x1] sm:$0x1]
    %119 = vset.pattern.permute.xlu0 1
    %120 = vperm.xlu0 %119, %v55
    %v121 = vpop.permute.xlu0 %120
    %123 = vset.pattern.permute.xlu0 1
    %124 = vperm.xlu0 %123, %v56
    %v125 = vpop.permute.xlu0 %124
    %v127 = vlaneseq
    %v128 = vshrl.u32 %v127, 7
    %v129 = vsub.s32 0, %v128
    %v130 = vrot.slane %v118, %v129
    %v131 = vmul.f32 %v121, %v130
    %v132 = vmul.f32 %v125, %v130
    %v133 = vld [vmem:[%s2 + $0x1] sm:$0x1]
    %v134 = vlaneseq
    %v135 = vshrl.u32 %v134, 7
    %v136 = vsub.s32 0, %v135
    %v137 = vrot.slane %v133, %v136
    %v138 = vadd.f32 %v131, %v137
    %v139 = vadd.f32 %v132, %v137
    %vm140 = vcmp.gt.f32.partialorder %v138, 0.0
    %vm141 = vcmp.gt.f32.partialorder %v139, 0.0
    %v142 = vmin.f32 %v138, 0.0
    %v143 = vmin.f32 %v139, 0.0
    %v144 = vmul.f32 %v142, 1.442695
    %v145 = vpow.pop %v144
    %v146 = vmul.f32 %v143, 1.442695
    %v147 = vpow.pop %v146
    %v148 = vsub.f32 %v145, 1.0
    %v149 = vsub.f32 %v147, 1.0
    %v150 = vsel %vm140, %v138, %v148
    %v151 = vsel %vm141, %v139, %v149
    %vm152 = vcmp.gt.f32.partialorder %v150, 0.0
    %vm153 = vcmp.gt.f32.partialorder %v151, 0.0
    %v154 = vmin.f32 %v150, 0.0
    %v155 = vmin.f32 %v151, 0.0
    %v156 = vmul.f32 %v154, 1.442695
    %v157 = vpow.pop %v156
    %v158 = vmul.f32 %v155, 1.442695
    %v159 = vpow.pop %v158
    %v160 = vsub.f32 %v157, 1.0
    %v161 = vsub.f32 %v159, 1.0
    %v162 = vsel %vm152, %v150, %v160
    %v163 = vsel %vm153, %v151, %v161
    %v164 = vmul.f32 %v162, 1.442695
    %v165 = vpow.pop %v164
    %v166 = vmul.f32 %v163, 1.442695
    %v167 = vpow.pop %v166
    %v168 = vsel %vm109, %v165, 0.0
    %169 = vadd.xlane.f32.xlu0 %v168
    %v170 = vpop.xlane.xlu0 %169
    %v171 = vsel %vm109, %v167, 0.0
    %172 = vadd.xlane.f32.xlu0 %v171
    %v173 = vpop.xlane.xlu0 %172
    %v174 = vadd.f32 %v116, %v170
    %v175 = vadd.f32 %v117, %v173
    %v176 = vld [vmem:[%s1 + $0x2] sm:$0x1]
    %177 = vset.pattern.permute.xlu0 2
    %178 = vperm.xlu0 %177, %v55
    %v179 = vpop.permute.xlu0 %178
    %181 = vset.pattern.permute.xlu0 2
    %182 = vperm.xlu0 %181, %v56
    %v183 = vpop.permute.xlu0 %182
    %v185 = vlaneseq
    %v186 = vshrl.u32 %v185, 7
    %v187 = vsub.s32 0, %v186
    %v188 = vrot.slane %v176, %v187
    %v189 = vmul.f32 %v179, %v188
    %v190 = vmul.f32 %v183, %v188
    %v191 = vld [vmem:[%s2 + $0x2] sm:$0x1]
    %v192 = vlaneseq
    %v193 = vshrl.u32 %v192, 7
    %v194 = vsub.s32 0, %v193
    %v195 = vrot.slane %v191, %v194
    %v196 = vadd.f32 %v189, %v195
    %v197 = vadd.f32 %v190, %v195
    %vm198 = vcmp.gt.f32.partialorder %v196, 0.0
    %vm199 = vcmp.gt.f32.partialorder %v197, 0.0
    %v200 = vmin.f32 %v196, 0.0
    %v201 = vmin.f32 %v197, 0.0
    %v202 = vmul.f32 %v200, 1.442695
    %v203 = vpow.pop %v202
    %v204 = vmul.f32 %v201, 1.442695
    %v205 = vpow.pop %v204
    %v206 = vsub.f32 %v203, 1.0
    %v207 = vsub.f32 %v205, 1.0
    %v208 = vsel %vm198, %v196, %v206
    %v209 = vsel %vm199, %v197, %v207
    %vm210 = vcmp.gt.f32.partialorder %v208, 0.0
    %vm211 = vcmp.gt.f32.partialorder %v209, 0.0
    %v212 = vmin.f32 %v208, 0.0
    %v213 = vmin.f32 %v209, 0.0
    %v214 = vmul.f32 %v212, 1.442695
    %v215 = vpow.pop %v214
    %v216 = vmul.f32 %v213, 1.442695
    %v217 = vpow.pop %v216
    %v218 = vsub.f32 %v215, 1.0
    %v219 = vsub.f32 %v217, 1.0
    %v220 = vsel %vm210, %v208, %v218
    %v221 = vsel %vm211, %v209, %v219
    %v222 = vmul.f32 %v220, 1.442695
    %v223 = vpow.pop %v222
    %v224 = vmul.f32 %v221, 1.442695
    %v225 = vpow.pop %v224
    %v226 = vsel %vm109, %v223, 0.0
    %227 = vadd.xlane.f32.xlu0 %v226
    %v228 = vpop.xlane.xlu0 %227
    %v229 = vsel %vm109, %v225, 0.0
    %230 = vadd.xlane.f32.xlu0 %v229
    %v231 = vpop.xlane.xlu0 %230
    %v232 = vadd.f32 %v174, %v228
    %v233 = vadd.f32 %v175, %v231
    %v234 = vld [vmem:[#allocation2] sm:$0xff]
    %v235 = vld [vmem:[#allocation2 + $0x8] sm:$0xff]
    %v236 = vld [vmem:[#allocation2 + $0x10] sm:$0xff]
    %v237 = vld [vmem:[#allocation2 + $0x18] sm:$0xff]
    %v239 = vsel %vm109, %v91, 0
    %v242 = vsel %vm109, %v92, 0
    %244 = vmatprep.subr.mxu0 0.0
    %245 = vmatpush1.msra.mxu0 0.0
    %246 = vmatprep.subr.mxu0 0.0
    %247 = vmatpush1.msra.mxu0 0.0
    %248 = vmatprep.subr.mxu0 0.0
    %249 = vmatpush1.msra.mxu0 0.0
    %250 = vmatprep.subr.mxu0 0.0
    %251 = vmatpush1.msra.mxu0 0.0
    %252 = vmatprep.subr.mxu0 0.0
    %253 = vmatpush1.msra.mxu0 0.0
    %254 = vmatprep.subr.mxu0 0.0
    %255 = vmatpush1.msra.mxu0 0.0
    %256 = vmatprep.subr.mxu0 0.0
    %257 = vmatpush1.msra.mxu0 0.0
    %258 = vmatprep.subr.mxu0 0.0
    %259 = vmatpush1.msra.mxu0 0.0
    %260 = vmatprep.subr.mxu0 0.0
    %261 = vmatpush1.msra.mxu0 0.0
    %262 = vmatprep.subr.mxu0 0.0
    %263 = vmatpush1.msra.mxu0 0.0
    %264 = vmatprep.subr.mxu0 0.0
    %265 = vmatpush1.msra.mxu0 0.0
    %266 = vmatprep.subr.mxu0 0.0
    %267 = vmatpush1.msra.mxu0 0.0
    %268 = vmatprep.subr.mxu0 0.0
    %269 = vmatpush1.msra.mxu0 %v237
    %270 = vmatprep.subr.mxu0 0.0
    %271 = vmatpush1.msra.mxu0 %v236
    %272 = vmatprep.subr.mxu0 0.0
    %273 = vmatpush1.msra.mxu0 %v235
    %274 = vmatprep.subr.mxu0 0.0
    %275 = vmatpush1.msra.mxu0 %v234
    %276 = vmatprep.subr.mxu0 0.0
    %277 = vmatpush2.msra.mxu0 0.0
    %278 = vmatprep.subr.mxu0 0.0
    %279 = vmatpush2.msra.mxu0 0.0
    %280 = vmatprep.subr.mxu0 0.0
    %281 = vmatpush2.msra.mxu0 0.0
    %282 = vmatprep.subr.mxu0 0.0
    %283 = vmatpush2.msra.mxu0 0.0
    %284 = vmatprep.subr.mxu0 0.0
    %285 = vmatpush2.msra.mxu0 0.0
    %286 = vmatprep.subr.mxu0 0.0
    %287 = vmatpush2.msra.mxu0 0.0
    %288 = vmatprep.subr.mxu0 0.0
    %289 = vmatpush2.msra.mxu0 0.0
    %290 = vmatprep.subr.mxu0 0.0
    %291 = vmatpush2.msra.mxu0 0.0
    %292 = vmatprep.subr.mxu0 0.0
    %293 = vmatpush2.msra.mxu0 0.0
    %294 = vmatprep.subr.mxu0 0.0
    %295 = vmatpush2.msra.mxu0 0.0
    %296 = vmatprep.subr.mxu0 0.0
    %297 = vmatpush2.msra.mxu0 0.0
    %298 = vmatprep.subr.mxu0 0.0
    %299 = vmatpush2.msra.mxu0 0.0
    %300 = vmatprep.subr.mxu0 0.0
    %301 = vmatpush2.msra.mxu0 0.0
    %302 = vmatprep.subr.mxu0 0.0
    %303 = vmatpush2.msra.mxu0 0.0
    %304 = vmatprep.subr.mxu0 0.0
    %305 = vmatpush2.msra.mxu0 0.0
    %306 = vmatprep.subr.mxu0 0.0
    %307 = vmatpush2.msra.mxu0 0.0
    %308 = vmatprep.mubr.f32.mxu0 0.0
    %309 = vmatmul.mubr.f32.gmra.mxu0 %v239
    %v310 = vpop.f32.mrf.mxu0
    %v311 = vadd.f32 0.0, %v310
    %v312 = vpop.f32.mrf.mxu0
    %313 = vmatprep.mubr.f32.mxu0 0.0
    %314 = vmatmul.mubr.f32.gmra.mxu0 %v242
    %v315 = vpop.f32.mrf.mxu0
    %v316 = vadd.f32 0.0, %v315
    %v317 = vpop.f32.mrf.mxu0
    %318 = vdwg.mxu0
    %v319 = vmul.f32 %v106, %v311
    %v320 = vmul.f32 %v108, %v316
    %v321 = vrcp.pop %v232
    %v322 = vmul.f32 %v319, %v321
    %v323 = vrcp.pop %v233
    %v324 = vmul.f32 %v320, %v323
    %vm325 = vcmp.gt.f32.partialorder %v322, 0.0
    %vm326 = vcmp.gt.f32.partialorder %v324, 0.0
    %v327 = vmin.f32 %v322, 0.0
    %v328 = vmin.f32 %v324, 0.0
    %v329 = vmul.f32 %v327, 1.442695
    %v330 = vpow.pop %v329
    %v331 = vmul.f32 %v328, 1.442695
    %v332 = vpow.pop %v331
    %v333 = vsub.f32 %v330, 1.0
    %v334 = vsub.f32 %v332, 1.0
    %v335 = vsel %vm325, %v322, %v333
    %v336 = vsel %vm326, %v324, %v334
    %v337 = vadd.f32 %v335, 0.0
    %v338 = vadd.f32 %v336, 0.0
    %s339 = scalar_lea.vmem [#allocation2], 32
    %v340 = vld [vmem:[%s339] sm:$0xff]
    %v341 = vld [vmem:[%s339 + $0x8] sm:$0xff]
    %v342 = vld [vmem:[%s339 + $0x10] sm:$0xff]
    %v343 = vld [vmem:[%s339 + $0x18] sm:$0xff]
    %v345 = vsel %vm109, %v150, 0
    %v348 = vsel %vm109, %v151, 0
    %350 = vmatprep.subr.mxu0 0.0
    %351 = vmatpush1.msra.mxu0 0.0
    %352 = vmatprep.subr.mxu0 0.0
    %353 = vmatpush1.msra.mxu0 0.0
    %354 = vmatprep.subr.mxu0 0.0
    %355 = vmatpush1.msra.mxu0 0.0
    %356 = vmatprep.subr.mxu0 0.0
    %357 = vmatpush1.msra.mxu0 0.0
    %358 = vmatprep.subr.mxu0 0.0
    %359 = vmatpush1.msra.mxu0 0.0
    %360 = vmatprep.subr.mxu0 0.0
    %361 = vmatpush1.msra.mxu0 0.0
    %362 = vmatprep.subr.mxu0 0.0
    %363 = vmatpush1.msra.mxu0 0.0
    %364 = vmatprep.subr.mxu0 0.0
    %365 = vmatpush1.msra.mxu0 0.0
    %366 = vmatprep.subr.mxu0 0.0
    %367 = vmatpush1.msra.mxu0 0.0
    %368 = vmatprep.subr.mxu0 0.0
    %369 = vmatpush1.msra.mxu0 0.0
    %370 = vmatprep.subr.mxu0 0.0
    %371 = vmatpush1.msra.mxu0 0.0
    %372 = vmatprep.subr.mxu0 0.0
    %373 = vmatpush1.msra.mxu0 0.0
    %374 = vmatprep.subr.mxu0 0.0
    %375 = vmatpush1.msra.mxu0 %v343
    %376 = vmatprep.subr.mxu0 0.0
    %377 = vmatpush1.msra.mxu0 %v342
    %378 = vmatprep.subr.mxu0 0.0
    %379 = vmatpush1.msra.mxu0 %v341
    %380 = vmatprep.subr.mxu0 0.0
    %381 = vmatpush1.msra.mxu0 %v340
    %382 = vmatprep.subr.mxu0 0.0
    %383 = vmatpush2.msra.mxu0 0.0
    %384 = vmatprep.subr.mxu0 0.0
    %385 = vmatpush2.msra.mxu0 0.0
    %386 = vmatprep.subr.mxu0 0.0
    %387 = vmatpush2.msra.mxu0 0.0
    %388 = vmatprep.subr.mxu0 0.0
    %389 = vmatpush2.msra.mxu0 0.0
    %390 = vmatprep.subr.mxu0 0.0
    %391 = vmatpush2.msra.mxu0 0.0
    %392 = vmatprep.subr.mxu0 0.0
    %393 = vmatpush2.msra.mxu0 0.0
    %394 = vmatprep.subr.mxu0 0.0
    %395 = vmatpush2.msra.mxu0 0.0
    %396 = vmatprep.subr.mxu0 0.0
    %397 = vmatpush2.msra.mxu0 0.0
    %398 = vmatprep.subr.mxu0 0.0
    %399 = vmatpush2.msra.mxu0 0.0
    %400 = vmatprep.subr.mxu0 0.0
    %401 = vmatpush2.msra.mxu0 0.0
    %402 = vmatprep.subr.mxu0 0.0
    %403 = vmatpush2.msra.mxu0 0.0
    %404 = vmatprep.subr.mxu0 0.0
    %405 = vmatpush2.msra.mxu0 0.0
    %406 = vmatprep.subr.mxu0 0.0
    %407 = vmatpush2.msra.mxu0 0.0
    %408 = vmatprep.subr.mxu0 0.0
    %409 = vmatpush2.msra.mxu0 0.0
    %410 = vmatprep.subr.mxu0 0.0
    %411 = vmatpush2.msra.mxu0 0.0
    %412 = vmatprep.subr.mxu0 0.0
    %413 = vmatpush2.msra.mxu0 0.0
    %414 = vmatprep.mubr.f32.mxu0 0.0
    %415 = vmatmul.mubr.f32.gmra.mxu0 %v345
    %v416 = vpop.f32.mrf.mxu0
    %v417 = vadd.f32 0.0, %v416
    %v418 = vpop.f32.mrf.mxu0
    %419 = vmatprep.mubr.f32.mxu0 0.0
    %420 = vmatmul.mubr.f32.gmra.mxu0 %v348
    %v421 = vpop.f32.mrf.mxu0
    %v422 = vadd.f32 0.0, %v421
    %v423 = vpop.f32.mrf.mxu0
    %424 = vdwg.mxu0
    %v425 = vmul.f32 %v165, %v417
    %v426 = vmul.f32 %v167, %v422
    %v427 = vmul.f32 %v425, %v321
    %v428 = vmul.f32 %v426, %v323
    %vm429 = vcmp.gt.f32.partialorder %v427, 0.0
    %vm430 = vcmp.gt.f32.partialorder %v428, 0.0
    %v431 = vmin.f32 %v427, 0.0
    %v432 = vmin.f32 %v428, 0.0
    %v433 = vmul.f32 %v431, 1.442695
    %v434 = vpow.pop %v433
    %v435 = vmul.f32 %v432, 1.442695
    %v436 = vpow.pop %v435
    %v437 = vsub.f32 %v434, 1.0
    %v438 = vsub.f32 %v436, 1.0
    %v439 = vsel %vm429, %v427, %v437
    %v440 = vsel %vm430, %v428, %v438
    %v441 = vadd.f32 %v337, %v439
    %v442 = vadd.f32 %v338, %v440
    %s443 = scalar_lea.vmem [#allocation2], 64
    %v444 = vld [vmem:[%s443] sm:$0xff]
    %v445 = vld [vmem:[%s443 + $0x8] sm:$0xff]
    %v446 = vld [vmem:[%s443 + $0x10] sm:$0xff]
    %v447 = vld [vmem:[%s443 + $0x18] sm:$0xff]
    %v449 = vsel %vm109, %v208, 0
    %v452 = vsel %vm109, %v209, 0
    %454 = vmatprep.subr.mxu0 0.0
    %455 = vmatpush1.msra.mxu0 0.0
    %456 = vmatprep.subr.mxu0 0.0
    %457 = vmatpush1.msra.mxu0 0.0
    %458 = vmatprep.subr.mxu0 0.0
    %459 = vmatpush1.msra.mxu0 0.0
    %460 = vmatprep.subr.mxu0 0.0
    %461 = vmatpush1.msra.mxu0 0.0
    %462 = vmatprep.subr.mxu0 0.0
    %463 = vmatpush1.msra.mxu0 0.0
    %464 = vmatprep.subr.mxu0 0.0
    %465 = vmatpush1.msra.mxu0 0.0
    %466 = vmatprep.subr.mxu0 0.0
    %467 = vmatpush1.msra.mxu0 0.0
    %468 = vmatprep.subr.mxu0 0.0
    %469 = vmatpush1.msra.mxu0 0.0
    %470 = vmatprep.subr.mxu0 0.0
    %471 = vmatpush1.msra.mxu0 0.0
    %472 = vmatprep.subr.mxu0 0.0
    %473 = vmatpush1.msra.mxu0 0.0
    %474 = vmatprep.subr.mxu0 0.0
    %475 = vmatpush1.msra.mxu0 0.0
    %476 = vmatprep.subr.mxu0 0.0
    %477 = vmatpush1.msra.mxu0 0.0
    %478 = vmatprep.subr.mxu0 0.0
    %479 = vmatpush1.msra.mxu0 %v447
    %480 = vmatprep.subr.mxu0 0.0
    %481 = vmatpush1.msra.mxu0 %v446
    %482 = vmatprep.subr.mxu0 0.0
    %483 = vmatpush1.msra.mxu0 %v445
    %484 = vmatprep.subr.mxu0 0.0
    %485 = vmatpush1.msra.mxu0 %v444
    %486 = vmatprep.subr.mxu0 0.0
    %487 = vmatpush2.msra.mxu0 0.0
    %488 = vmatprep.subr.mxu0 0.0
    %489 = vmatpush2.msra.mxu0 0.0
    %490 = vmatprep.subr.mxu0 0.0
    %491 = vmatpush2.msra.mxu0 0.0
    %492 = vmatprep.subr.mxu0 0.0
    %493 = vmatpush2.msra.mxu0 0.0
    %494 = vmatprep.subr.mxu0 0.0
    %495 = vmatpush2.msra.mxu0 0.0
    %496 = vmatprep.subr.mxu0 0.0
    %497 = vmatpush2.msra.mxu0 0.0
    %498 = vmatprep.subr.mxu0 0.0
    %499 = vmatpush2.msra.mxu0 0.0
    %500 = vmatprep.subr.mxu0 0.0
    %501 = vmatpush2.msra.mxu0 0.0
    %502 = vmatprep.subr.mxu0 0.0
    %503 = vmatpush2.msra.mxu0 0.0
    %504 = vmatprep.subr.mxu0 0.0
    %505 = vmatpush2.msra.mxu0 0.0
    %506 = vmatprep.subr.mxu0 0.0
    %507 = vmatpush2.msra.mxu0 0.0
    %508 = vmatprep.subr.mxu0 0.0
    %509 = vmatpush2.msra.mxu0 0.0
    %510 = vmatprep.subr.mxu0 0.0
    %511 = vmatpush2.msra.mxu0 0.0
    %512 = vmatprep.subr.mxu0 0.0
    %513 = vmatpush2.msra.mxu0 0.0
    %514 = vmatprep.subr.mxu0 0.0
    %515 = vmatpush2.msra.mxu0 0.0
    %516 = vmatprep.subr.mxu0 0.0
    %517 = vmatpush2.msra.mxu0 0.0
    %518 = vmatprep.mubr.f32.mxu0 0.0
    %519 = vmatmul.mubr.f32.gmra.mxu0 %v449
    %v520 = vpop.f32.mrf.mxu0
    %v521 = vadd.f32 0.0, %v520
    %v522 = vpop.f32.mrf.mxu0
    %523 = vmatprep.mubr.f32.mxu0 0.0
    %524 = vmatmul.mubr.f32.gmra.mxu0 %v452
    %v525 = vpop.f32.mrf.mxu0
    %v526 = vadd.f32 0.0, %v525
    %v527 = vpop.f32.mrf.mxu0
    %528 = vdwg.mxu0
    %v529 = vmul.f32 %v223, %v521
    %v530 = vmul.f32 %v225, %v526
    %v531 = vmul.f32 %v529, %v321
    %v532 = vmul.f32 %v530, %v323
    %vm533 = vcmp.gt.f32.partialorder %v531, 0.0
    %vm534 = vcmp.gt.f32.partialorder %v532, 0.0
    %v535 = vmin.f32 %v531, 0.0
    %v536 = vmin.f32 %v532, 0.0
    %v537 = vmul.f32 %v535, 1.442695
    %v538 = vpow.pop %v537
    %v539 = vmul.f32 %v536, 1.442695
    %v540 = vpow.pop %v539
    %v541 = vsub.f32 %v538, 1.0
    %v542 = vsub.f32 %v540, 1.0
    %v543 = vsel %vm533, %v531, %v541
    %v544 = vsel %vm534, %v532, %v542
    %v545 = vadd.f32 %v441, %v543
    %v546 = vadd.f32 %v442, %v544
    %v547 = vrcp.pop 3.0
    %v548 = vmul.f32 %v545, %v547
    %v549 = vmul.f32 %v546, %v547
    %vm550 = vcmp.gt.f32.partialorder %v548, 0.0
    %vm551 = vcmp.gt.f32.partialorder %v549, 0.0
    %v552 = vmin.f32 %v548, 0.0
    %v553 = vmin.f32 %v549, 0.0
    %v554 = vmul.f32 %v552, 1.442695
    %v555 = vpow.pop %v554
    %v556 = vmul.f32 %v553, 1.442695
    %v557 = vpow.pop %v556
    %v558 = vsub.f32 %v555, 1.0
    %v559 = vsub.f32 %v557, 1.0
    %v560 = vsel %vm550, %v548, %v558
    %v561 = vsel %vm551, %v549, %v559
    %v562 = vld [vmem:[%s5] sm:$0xf]
    %vm563 = vcmp.gt.f32.partialorder %v560, 0.0
    %vm564 = vcmp.gt.f32.partialorder %v561, 0.0
    %v565 = vmin.f32 %v560, 0.0
    %v566 = vmin.f32 %v561, 0.0
    %v567 = vmul.f32 %v565, 1.442695
    %v568 = vpow.pop %v567
    %v569 = vmul.f32 %v566, 1.442695
    %v570 = vpow.pop %v569
    %v571 = vsub.f32 %v568, 1.0
    %v572 = vsub.f32 %v570, 1.0
    %v573 = vsel %vm563, %v560, %v571
    %v574 = vsel %vm564, %v561, %v572
    %v575 = vmul.f32 %v573, 1.442695
    %v576 = vpow.pop %v575
    %v577 = vmul.f32 %v574, 1.442695
    %v578 = vpow.pop %v577
    %vm579 = vcmask 130048
    %v581 = vsel %vm579, %v562, 0
    %583 = vmatprep.subr.mxu0 0.0
    %584 = vmatpush1.msra.mxu0 0.0
    %585 = vmatprep.subr.mxu0 0.0
    %586 = vmatpush1.msra.mxu0 0.0
    %587 = vmatprep.subr.mxu0 0.0
    %588 = vmatpush1.msra.mxu0 0.0
    %589 = vmatprep.subr.mxu0 0.0
    %590 = vmatpush1.msra.mxu0 0.0
    %591 = vmatprep.subr.mxu0 0.0
    %592 = vmatpush1.msra.mxu0 0.0
    %593 = vmatprep.subr.mxu0 0.0
    %594 = vmatpush1.msra.mxu0 0.0
    %595 = vmatprep.subr.mxu0 0.0
    %596 = vmatpush1.msra.mxu0 0.0
    %597 = vmatprep.subr.mxu0 0.0
    %598 = vmatpush1.msra.mxu0 0.0
    %599 = vmatprep.subr.mxu0 0.0
    %600 = vmatpush1.msra.mxu0 0.0
    %601 = vmatprep.subr.mxu0 0.0
    %602 = vmatpush1.msra.mxu0 0.0
    %603 = vmatprep.subr.mxu0 0.0
    %604 = vmatpush1.msra.mxu0 0.0
    %605 = vmatprep.subr.mxu0 0.0
    %606 = vmatpush1.msra.mxu0 0.0
    %607 = vmatprep.subr.mxu0 0.0
    %608 = vmatpush1.msra.mxu0 0.0
    %609 = vmatprep.subr.mxu0 0.0
    %610 = vmatpush1.msra.mxu0 0.0
    %611 = vmatprep.subr.mxu0 0.0
    %612 = vmatpush1.msra.mxu0 %v578
    %613 = vmatprep.subr.mxu0 0.0
    %614 = vmatpush1.msra.mxu0 %v576
    %615 = vmatprep.subr.mxu0 0.0
    %616 = vmatpush2.msra.mxu0 0.0
    %617 = vmatprep.subr.mxu0 0.0
    %618 = vmatpush2.msra.mxu0 0.0
    %619 = vmatprep.subr.mxu0 0.0
    %620 = vmatpush2.msra.mxu0 0.0
    %621 = vmatprep.subr.mxu0 0.0
    %622 = vmatpush2.msra.mxu0 0.0
    %623 = vmatprep.subr.mxu0 0.0
    %624 = vmatpush2.msra.mxu0 0.0
    %625 = vmatprep.subr.mxu0 0.0
    %626 = vmatpush2.msra.mxu0 0.0
    %627 = vmatprep.subr.mxu0 0.0
    %628 = vmatpush2.msra.mxu0 0.0
    %629 = vmatprep.subr.mxu0 0.0
    %630 = vmatpush2.msra.mxu0 0.0
    %631 = vmatprep.subr.mxu0 0.0
    %632 = vmatpush2.msra.mxu0 0.0
    %633 = vmatprep.subr.mxu0 0.0
    %634 = vmatpush2.msra.mxu0 0.0
    %635 = vmatprep.subr.mxu0 0.0
    %636 = vmatpush2.msra.mxu0 0.0
    %637 = vmatprep.subr.mxu0 0.0
    %638 = vmatpush2.msra.mxu0 0.0
    %639 = vmatprep.subr.mxu0 0.0
    %640 = vmatpush2.msra.mxu0 0.0
    %641 = vmatprep.subr.mxu0 0.0
    %642 = vmatpush2.msra.mxu0 0.0
    %643 = vmatprep.subr.mxu0 0.0
    %644 = vmatpush2.msra.mxu0 0.0
    %645 = vmatprep.subr.mxu0 0.0
    %646 = vmatpush2.msra.mxu0 0.0
    %647 = vmatprep.mubr.f32.mxu0 0.0
    %648 = vmatmul.mubr.f32.gmra.mxu0 %v581
    %v649 = vpop.f32.mrf.mxu0
    %v650 = vadd.f32 0.0, %v649
    %v651 = vpop.f32.mrf.mxu0
    %652 = vdwg.mxu0
    %v653 = vld [vmem:[%s6] sm:$0xf]
    %v655 = vsel %vm579, %v653, 0
    %657 = vmatprep.subr.mxu0 0.0
    %658 = vmatpush1.msra.mxu0 0.0
    %659 = vmatprep.subr.mxu0 0.0
    %660 = vmatpush1.msra.mxu0 0.0
    %661 = vmatprep.subr.mxu0 0.0
    %662 = vmatpush1.msra.mxu0 0.0
    %663 = vmatprep.subr.mxu0 0.0
    %664 = vmatpush1.msra.mxu0 0.0
    %665 = vmatprep.subr.mxu0 0.0
    %666 = vmatpush1.msra.mxu0 0.0
    %667 = vmatprep.subr.mxu0 0.0
    %668 = vmatpush1.msra.mxu0 0.0
    %669 = vmatprep.subr.mxu0 0.0
    %670 = vmatpush1.msra.mxu0 0.0
    %671 = vmatprep.subr.mxu0 0.0
    %672 = vmatpush1.msra.mxu0 0.0
    %673 = vmatprep.subr.mxu0 0.0
    %674 = vmatpush1.msra.mxu0 0.0
    %675 = vmatprep.subr.mxu0 0.0
    %676 = vmatpush1.msra.mxu0 0.0
    %677 = vmatprep.subr.mxu0 0.0
    %678 = vmatpush1.msra.mxu0 0.0
    %679 = vmatprep.subr.mxu0 0.0
    %680 = vmatpush1.msra.mxu0 0.0
    %681 = vmatprep.subr.mxu0 0.0
    %682 = vmatpush1.msra.mxu0 0.0
    %683 = vmatprep.subr.mxu0 0.0
    %684 = vmatpush1.msra.mxu0 0.0
    %685 = vmatprep.subr.mxu0 0.0
    %686 = vmatpush1.msra.mxu0 %v561
    %687 = vmatprep.subr.mxu0 0.0
    %688 = vmatpush1.msra.mxu0 %v560
    %689 = vmatprep.subr.mxu0 0.0
    %690 = vmatpush2.msra.mxu0 0.0
    %691 = vmatprep.subr.mxu0 0.0
    %692 = vmatpush2.msra.mxu0 0.0
    %693 = vmatprep.subr.mxu0 0.0
    %694 = vmatpush2.msra.mxu0 0.0
    %695 = vmatprep.subr.mxu0 0.0
    %696 = vmatpush2.msra.mxu0 0.0
    %697 = vmatprep.subr.mxu0 0.0
    %698 = vmatpush2.msra.mxu0 0.0
    %699 = vmatprep.subr.mxu0 0.0
    %700 = vmatpush2.msra.mxu0 0.0
    %701 = vmatprep.subr.mxu0 0.0
    %702 = vmatpush2.msra.mxu0 0.0
    %703 = vmatprep.subr.mxu0 0.0
    %704 = vmatpush2.msra.mxu0 0.0
    %705 = vmatprep.subr.mxu0 0.0
    %706 = vmatpush2.msra.mxu0 0.0
    %707 = vmatprep.subr.mxu0 0.0
    %708 = vmatpush2.msra.mxu0 0.0
    %709 = vmatprep.subr.mxu0 0.0
    %710 = vmatpush2.msra.mxu0 0.0
    %711 = vmatprep.subr.mxu0 0.0
    %712 = vmatpush2.msra.mxu0 0.0
    %713 = vmatprep.subr.mxu0 0.0
    %714 = vmatpush2.msra.mxu0 0.0
    %715 = vmatprep.subr.mxu0 0.0
    %716 = vmatpush2.msra.mxu0 0.0
    %717 = vmatprep.subr.mxu0 0.0
    %718 = vmatpush2.msra.mxu0 0.0
    %719 = vmatprep.subr.mxu0 0.0
    %720 = vmatpush2.msra.mxu0 0.0
    %721 = vmatprep.mubr.f32.mxu0 0.0
    %722 = vmatmul.mubr.f32.gmra.mxu0 %v655
    %v723 = vpop.f32.mrf.mxu0
    %v724 = vadd.f32 0.0, %v723
    %v725 = vpop.f32.mrf.mxu0
    %726 = vdwg.mxu0
    %vm727 = vcmp.gt.f32.partialorder %v724, 0.0
    %v728 = vmin.f32 %v724, 0.0
    %v729 = vmul.f32 %v728, 1.442695
    %v730 = vpow.pop %v729
    %v731 = vsub.f32 %v730, 1.0
    %v732 = vsel %vm727, %v724, %v731
    %v733 = vmul.f32 %v732, 1.442695
    %v734 = vpow.pop %v733
    %v735 = vrcp.pop %v650
    %v736 = vmul.f32 %v734, %v735
    %v737 = vld [vmem:[#allocation5] sm:$0xff]
    %v738 = vld [vmem:[#allocation5 + $0x8] sm:$0xff]
    %v739 = vld [vmem:[#allocation5 + $0x10] sm:$0xff]
    %v740 = vld [vmem:[#allocation5 + $0x18] sm:$0xff]
    %v742 = vsel %vm109, %v724, 0
    %744 = vmatprep.subr.mxu0 0.0
    %745 = vmatpush1.msra.mxu0 0.0
    %746 = vmatprep.subr.mxu0 0.0
    %747 = vmatpush1.msra.mxu0 0.0
    %748 = vmatprep.subr.mxu0 0.0
    %749 = vmatpush1.msra.mxu0 0.0
    %750 = vmatprep.subr.mxu0 0.0
    %751 = vmatpush1.msra.mxu0 0.0
    %752 = vmatprep.subr.mxu0 0.0
    %753 = vmatpush1.msra.mxu0 0.0
    %754 = vmatprep.subr.mxu0 0.0
    %755 = vmatpush1.msra.mxu0 0.0
    %756 = vmatprep.subr.mxu0 0.0
    %757 = vmatpush1.msra.mxu0 0.0
    %758 = vmatprep.subr.mxu0 0.0
    %759 = vmatpush1.msra.mxu0 0.0
    %760 = vmatprep.subr.mxu0 0.0
    %761 = vmatpush1.msra.mxu0 0.0
    %762 = vmatprep.subr.mxu0 0.0
    %763 = vmatpush1.msra.mxu0 0.0
    %764 = vmatprep.subr.mxu0 0.0
    %765 = vmatpush1.msra.mxu0 0.0
    %766 = vmatprep.subr.mxu0 0.0
    %767 = vmatpush1.msra.mxu0 0.0
    %768 = vmatprep.subr.mxu0 0.0
    %769 = vmatpush1.msra.mxu0 %v740
    %770 = vmatprep.subr.mxu0 0.0
    %771 = vmatpush1.msra.mxu0 %v739
    %772 = vmatprep.subr.mxu0 0.0
    %773 = vmatpush1.msra.mxu0 %v738
    %774 = vmatprep.subr.mxu0 0.0
    %775 = vmatpush1.msra.mxu0 %v737
    %776 = vmatprep.subr.mxu0 0.0
    %777 = vmatpush2.msra.mxu0 0.0
    %778 = vmatprep.subr.mxu0 0.0
    %779 = vmatpush2.msra.mxu0 0.0
    %780 = vmatprep.subr.mxu0 0.0
    %781 = vmatpush2.msra.mxu0 0.0
    %782 = vmatprep.subr.mxu0 0.0
    %783 = vmatpush2.msra.mxu0 0.0
    %784 = vmatprep.subr.mxu0 0.0
    %785 = vmatpush2.msra.mxu0 0.0
    %786 = vmatprep.subr.mxu0 0.0
    %787 = vmatpush2.msra.mxu0 0.0
    %788 = vmatprep.subr.mxu0 0.0
    %789 = vmatpush2.msra.mxu0 0.0
    %790 = vmatprep.subr.mxu0 0.0
    %791 = vmatpush2.msra.mxu0 0.0
    %792 = vmatprep.subr.mxu0 0.0
    %793 = vmatpush2.msra.mxu0 0.0
    %794 = vmatprep.subr.mxu0 0.0
    %795 = vmatpush2.msra.mxu0 0.0
    %796 = vmatprep.subr.mxu0 0.0
    %797 = vmatpush2.msra.mxu0 0.0
    %798 = vmatprep.subr.mxu0 0.0
    %799 = vmatpush2.msra.mxu0 0.0
    %800 = vmatprep.subr.mxu0 0.0
    %801 = vmatpush2.msra.mxu0 0.0
    %802 = vmatprep.subr.mxu0 0.0
    %803 = vmatpush2.msra.mxu0 0.0
    %804 = vmatprep.subr.mxu0 0.0
    %805 = vmatpush2.msra.mxu0 0.0
    %806 = vmatprep.subr.mxu0 0.0
    %807 = vmatpush2.msra.mxu0 0.0
    %808 = vmatprep.mubr.f32.mxu0 0.0
    %809 = vmatmul.mubr.f32.gmra.mxu0 %v742
    %v810 = vpop.f32.mrf.mxu0
    %v811 = vadd.f32 0.0, %v810
    %v812 = vpop.f32.mrf.mxu0
    %813 = vdwg.mxu0
    %v814 = vmul.f32 %v736, %v811
    %s815 = scalar_lea.vmem %s6, 4
    %v816 = vld [vmem:[%s815] sm:$0xf]
    %v818 = vsel %vm579, %v816, 0
    %820 = vmatprep.subr.mxu0 0.0
    %821 = vmatpush1.msra.mxu0 0.0
    %822 = vmatprep.subr.mxu0 0.0
    %823 = vmatpush1.msra.mxu0 0.0
    %824 = vmatprep.subr.mxu0 0.0
    %825 = vmatpush1.msra.mxu0 0.0
    %826 = vmatprep.subr.mxu0 0.0
    %827 = vmatpush1.msra.mxu0 0.0
    %828 = vmatprep.subr.mxu0 0.0
    %829 = vmatpush1.msra.mxu0 0.0
    %830 = vmatprep.subr.mxu0 0.0
    %831 = vmatpush1.msra.mxu0 0.0
    %832 = vmatprep.subr.mxu0 0.0
    %833 = vmatpush1.msra.mxu0 0.0
    %834 = vmatprep.subr.mxu0 0.0
    %835 = vmatpush1.msra.mxu0 0.0
    %836 = vmatprep.subr.mxu0 0.0
    %837 = vmatpush1.msra.mxu0 0.0
    %838 = vmatprep.subr.mxu0 0.0
    %839 = vmatpush1.msra.mxu0 0.0
    %840 = vmatprep.subr.mxu0 0.0
    %841 = vmatpush1.msra.mxu0 0.0
    %842 = vmatprep.subr.mxu0 0.0
    %843 = vmatpush1.msra.mxu0 0.0
    %844 = vmatprep.subr.mxu0 0.0
    %845 = vmatpush1.msra.mxu0 0.0
    %846 = vmatprep.subr.mxu0 0.0
    %847 = vmatpush1.msra.mxu0 0.0
    %848 = vmatprep.subr.mxu0 0.0
    %849 = vmatpush1.msra.mxu0 %v561
    %850 = vmatprep.subr.mxu0 0.0
    %851 = vmatpush1.msra.mxu0 %v560
    %852 = vmatprep.subr.mxu0 0.0
    %853 = vmatpush2.msra.mxu0 0.0
    %854 = vmatprep.subr.mxu0 0.0
    %855 = vmatpush2.msra.mxu0 0.0
    %856 = vmatprep.subr.mxu0 0.0
    %857 = vmatpush2.msra.mxu0 0.0
    %858 = vmatprep.subr.mxu0 0.0
    %859 = vmatpush2.msra.mxu0 0.0
    %860 = vmatprep.subr.mxu0 0.0
    %861 = vmatpush2.msra.mxu0 0.0
    %862 = vmatprep.subr.mxu0 0.0
    %863 = vmatpush2.msra.mxu0 0.0
    %864 = vmatprep.subr.mxu0 0.0
    %865 = vmatpush2.msra.mxu0 0.0
    %866 = vmatprep.subr.mxu0 0.0
    %867 = vmatpush2.msra.mxu0 0.0
    %868 = vmatprep.subr.mxu0 0.0
    %869 = vmatpush2.msra.mxu0 0.0
    %870 = vmatprep.subr.mxu0 0.0
    %871 = vmatpush2.msra.mxu0 0.0
    %872 = vmatprep.subr.mxu0 0.0
    %873 = vmatpush2.msra.mxu0 0.0
    %874 = vmatprep.subr.mxu0 0.0
    %875 = vmatpush2.msra.mxu0 0.0
    %876 = vmatprep.subr.mxu0 0.0
    %877 = vmatpush2.msra.mxu0 0.0
    %878 = vmatprep.subr.mxu0 0.0
    %879 = vmatpush2.msra.mxu0 0.0
    %880 = vmatprep.subr.mxu0 0.0
    %881 = vmatpush2.msra.mxu0 0.0
    %882 = vmatprep.subr.mxu0 0.0
    %883 = vmatpush2.msra.mxu0 0.0
    %884 = vmatprep.mubr.f32.mxu0 0.0
    %885 = vmatmul.mubr.f32.gmra.mxu0 %v818
    %v886 = vpop.f32.mrf.mxu0
    %v887 = vadd.f32 0.0, %v886
    %v888 = vpop.f32.mrf.mxu0
    %889 = vdwg.mxu0
    %vm890 = vcmp.gt.f32.partialorder %v887, 0.0
    %v891 = vmin.f32 %v887, 0.0
    %v892 = vmul.f32 %v891, 1.442695
    %v893 = vpow.pop %v892
    %v894 = vsub.f32 %v893, 1.0
    %v895 = vsel %vm890, %v887, %v894
    %v896 = vmul.f32 %v895, 1.442695
    %v897 = vpow.pop %v896
    %v898 = vmul.f32 %v897, %v735
    %s899 = scalar_lea.vmem [#allocation5], 32
    %v900 = vld [vmem:[%s899] sm:$0xff]
    %v901 = vld [vmem:[%s899 + $0x8] sm:$0xff]
    %v902 = vld [vmem:[%s899 + $0x10] sm:$0xff]
    %v903 = vld [vmem:[%s899 + $0x18] sm:$0xff]
    %v905 = vsel %vm109, %v887, 0
    %907 = vmatprep.subr.mxu0 0.0
    %908 = vmatpush1.msra.mxu0 0.0
    %909 = vmatprep.subr.mxu0 0.0
    %910 = vmatpush1.msra.mxu0 0.0
    %911 = vmatprep.subr.mxu0 0.0
    %912 = vmatpush1.msra.mxu0 0.0
    %913 = vmatprep.subr.mxu0 0.0
    %914 = vmatpush1.msra.mxu0 0.0
    %915 = vmatprep.subr.mxu0 0.0
    %916 = vmatpush1.msra.mxu0 0.0
    %917 = vmatprep.subr.mxu0 0.0
    %918 = vmatpush1.msra.mxu0 0.0
    %919 = vmatprep.subr.mxu0 0.0
    %920 = vmatpush1.msra.mxu0 0.0
    %921 = vmatprep.subr.mxu0 0.0
    %922 = vmatpush1.msra.mxu0 0.0
    %923 = vmatprep.subr.mxu0 0.0
    %924 = vmatpush1.msra.mxu0 0.0
    %925 = vmatprep.subr.mxu0 0.0
    %926 = vmatpush1.msra.mxu0 0.0
    %927 = vmatprep.subr.mxu0 0.0
    %928 = vmatpush1.msra.mxu0 0.0
    %929 = vmatprep.subr.mxu0 0.0
    %930 = vmatpush1.msra.mxu0 0.0
    %931 = vmatprep.subr.mxu0 0.0
    %932 = vmatpush1.msra.mxu0 %v903
    %933 = vmatprep.subr.mxu0 0.0
    %934 = vmatpush1.msra.mxu0 %v902
    %935 = vmatprep.subr.mxu0 0.0
    %936 = vmatpush1.msra.mxu0 %v901
    %937 = vmatprep.subr.mxu0 0.0
    %938 = vmatpush1.msra.mxu0 %v900
    %939 = vmatprep.subr.mxu0 0.0
    %940 = vmatpush2.msra.mxu0 0.0
    %941 = vmatprep.subr.mxu0 0.0
    %942 = vmatpush2.msra.mxu0 0.0
    %943 = vmatprep.subr.mxu0 0.0
    %944 = vmatpush2.msra.mxu0 0.0
    %945 = vmatprep.subr.mxu0 0.0
    %946 = vmatpush2.msra.mxu0 0.0
    %947 = vmatprep.subr.mxu0 0.0
    %948 = vmatpush2.msra.mxu0 0.0
    %949 = vmatprep.subr.mxu0 0.0
    %950 = vmatpush2.msra.mxu0 0.0
    %951 = vmatprep.subr.mxu0 0.0
    %952 = vmatpush2.msra.mxu0 0.0
    %953 = vmatprep.subr.mxu0 0.0
    %954 = vmatpush2.msra.mxu0 0.0
    %955 = vmatprep.subr.mxu0 0.0
    %956 = vmatpush2.msra.mxu0 0.0
    %957 = vmatprep.subr.mxu0 0.0
    %958 = vmatpush2.msra.mxu0 0.0
    %959 = vmatprep.subr.mxu0 0.0
    %960 = vmatpush2.msra.mxu0 0.0
    %961 = vmatprep.subr.mxu0 0.0
    %962 = vmatpush2.msra.mxu0 0.0
    %963 = vmatprep.subr.mxu0 0.0
    %964 = vmatpush2.msra.mxu0 0.0
    %965 = vmatprep.subr.mxu0 0.0
    %966 = vmatpush2.msra.mxu0 0.0
    %967 = vmatprep.subr.mxu0 0.0
    %968 = vmatpush2.msra.mxu0 0.0
    %969 = vmatprep.subr.mxu0 0.0
    %970 = vmatpush2.msra.mxu0 0.0
    %971 = vmatprep.mubr.f32.mxu0 0.0
    %972 = vmatmul.mubr.f32.gmra.mxu0 %v905
    %v973 = vpop.f32.mrf.mxu0
    %v974 = vadd.f32 0.0, %v973
    %v975 = vpop.f32.mrf.mxu0
    %976 = vdwg.mxu0
    %v977 = vmul.f32 %v898, %v974
    %s978 = scalar_lea.vmem %s6, 8
    %v979 = vld [vmem:[%s978] sm:$0xf]
    %v981 = vsel %vm579, %v979, 0
    %983 = vmatprep.subr.mxu0 0.0
    %984 = vmatpush1.msra.mxu0 0.0
    %985 = vmatprep.subr.mxu0 0.0
    %986 = vmatpush1.msra.mxu0 0.0
    %987 = vmatprep.subr.mxu0 0.0
    %988 = vmatpush1.msra.mxu0 0.0
    %989 = vmatprep.subr.mxu0 0.0
    %990 = vmatpush1.msra.mxu0 0.0
    %991 = vmatprep.subr.mxu0 0.0
    %992 = vmatpush1.msra.mxu0 0.0
    %993 = vmatprep.subr.mxu0 0.0
    %994 = vmatpush1.msra.mxu0 0.0
    %995 = vmatprep.subr.mxu0 0.0
    %996 = vmatpush1.msra.mxu0 0.0
    %997 = vmatprep.subr.mxu0 0.0
    %998 = vmatpush1.msra.mxu0 0.0
    %999 = vmatprep.subr.mxu0 0.0
    %1000 = vmatpush1.msra.mxu0 0.0
    %1001 = vmatprep.subr.mxu0 0.0
    %1002 = vmatpush1.msra.mxu0 0.0
    %1003 = vmatprep.subr.mxu0 0.0
    %1004 = vmatpush1.msra.mxu0 0.0
    %1005 = vmatprep.subr.mxu0 0.0
    %1006 = vmatpush1.msra.mxu0 0.0
    %1007 = vmatprep.subr.mxu0 0.0
    %1008 = vmatpush1.msra.mxu0 0.0
    %1009 = vmatprep.subr.mxu0 0.0
    %1010 = vmatpush1.msra.mxu0 0.0
    %1011 = vmatprep.subr.mxu0 0.0
    %1012 = vmatpush1.msra.mxu0 %v561
    %1013 = vmatprep.subr.mxu0 0.0
    %1014 = vmatpush1.msra.mxu0 %v560
    %1015 = vmatprep.subr.mxu0 0.0
    %1016 = vmatpush2.msra.mxu0 0.0
    %1017 = vmatprep.subr.mxu0 0.0
    %1018 = vmatpush2.msra.mxu0 0.0
    %1019 = vmatprep.subr.mxu0 0.0
    %1020 = vmatpush2.msra.mxu0 0.0
    %1021 = vmatprep.subr.mxu0 0.0
    %1022 = vmatpush2.msra.mxu0 0.0
    %1023 = vmatprep.subr.mxu0 0.0
    %1024 = vmatpush2.msra.mxu0 0.0
    %1025 = vmatprep.subr.mxu0 0.0
    %1026 = vmatpush2.msra.mxu0 0.0
    %1027 = vmatprep.subr.mxu0 0.0
    %1028 = vmatpush2.msra.mxu0 0.0
    %1029 = vmatprep.subr.mxu0 0.0
    %1030 = vmatpush2.msra.mxu0 0.0
    %1031 = vmatprep.subr.mxu0 0.0
    %1032 = vmatpush2.msra.mxu0 0.0
    %1033 = vmatprep.subr.mxu0 0.0
    %1034 = vmatpush2.msra.mxu0 0.0
    %1035 = vmatprep.subr.mxu0 0.0
    %1036 = vmatpush2.msra.mxu0 0.0
    %1037 = vmatprep.subr.mxu0 0.0
    %1038 = vmatpush2.msra.mxu0 0.0
    %1039 = vmatprep.subr.mxu0 0.0
    %1040 = vmatpush2.msra.mxu0 0.0
    %1041 = vmatprep.subr.mxu0 0.0
    %1042 = vmatpush2.msra.mxu0 0.0
    %1043 = vmatprep.subr.mxu0 0.0
    %1044 = vmatpush2.msra.mxu0 0.0
    %1045 = vmatprep.subr.mxu0 0.0
    %1046 = vmatpush2.msra.mxu0 0.0
    %1047 = vmatprep.mubr.f32.mxu0 0.0
    %1048 = vmatmul.mubr.f32.gmra.mxu0 %v981
    %v1049 = vpop.f32.mrf.mxu0
    %v1050 = vadd.f32 0.0, %v1049
    %v1051 = vpop.f32.mrf.mxu0
    %1052 = vdwg.mxu0
    %vm1053 = vcmp.gt.f32.partialorder %v1050, 0.0
    %v1054 = vmin.f32 %v1050, 0.0
    %v1055 = vmul.f32 %v1054, 1.442695
    %v1056 = vpow.pop %v1055
    %v1057 = vsub.f32 %v1056, 1.0
    %v1058 = vsel %vm1053, %v1050, %v1057
    %v1059 = vmul.f32 %v1058, 1.442695
    %v1060 = vpow.pop %v1059
    %v1061 = vmul.f32 %v1060, %v735
    %s1062 = scalar_lea.vmem [#allocation5], 64
    %v1063 = vld [vmem:[%s1062] sm:$0xff]
    %v1064 = vld [vmem:[%s1062 + $0x8] sm:$0xff]
    %v1065 = vld [vmem:[%s1062 + $0x10] sm:$0xff]
    %v1066 = vld [vmem:[%s1062 + $0x18] sm:$0xff]
    %v1068 = vsel %vm109, %v1050, 0
    %1070 = vmatprep.subr.mxu0 0.0
    %1071 = vmatpush1.msra.mxu0 0.0
    %1072 = vmatprep.subr.mxu0 0.0
    %1073 = vmatpush1.msra.mxu0 0.0
    %1074 = vmatprep.subr.mxu0 0.0
    %1075 = vmatpush1.msra.mxu0 0.0
    %1076 = vmatprep.subr.mxu0 0.0
    %1077 = vmatpush1.msra.mxu0 0.0
    %1078 = vmatprep.subr.mxu0 0.0
    %1079 = vmatpush1.msra.mxu0 0.0
    %1080 = vmatprep.subr.mxu0 0.0
    %1081 = vmatpush1.msra.mxu0 0.0
    %1082 = vmatprep.subr.mxu0 0.0
    %1083 = vmatpush1.msra.mxu0 0.0
    %1084 = vmatprep.subr.mxu0 0.0
    %1085 = vmatpush1.msra.mxu0 0.0
    %1086 = vmatprep.subr.mxu0 0.0
    %1087 = vmatpush1.msra.mxu0 0.0
    %1088 = vmatprep.subr.mxu0 0.0
    %1089 = vmatpush1.msra.mxu0 0.0
    %1090 = vmatprep.subr.mxu0 0.0
    %1091 = vmatpush1.msra.mxu0 0.0
    %1092 = vmatprep.subr.mxu0 0.0
    %1093 = vmatpush1.msra.mxu0 0.0
    %1094 = vmatprep.subr.mxu0 0.0
    %1095 = vmatpush1.msra.mxu0 %v1066
    %1096 = vmatprep.subr.mxu0 0.0
    %1097 = vmatpush1.msra.mxu0 %v1065
    %1098 = vmatprep.subr.mxu0 0.0
    %1099 = vmatpush1.msra.mxu0 %v1064
    %1100 = vmatprep.subr.mxu0 0.0
    %1101 = vmatpush1.msra.mxu0 %v1063
    %1102 = vmatprep.subr.mxu0 0.0
    %1103 = vmatpush2.msra.mxu0 0.0
    %1104 = vmatprep.subr.mxu0 0.0
    %1105 = vmatpush2.msra.mxu0 0.0
    %1106 = vmatprep.subr.mxu0 0.0
    %1107 = vmatpush2.msra.mxu0 0.0
    %1108 = vmatprep.subr.mxu0 0.0
    %1109 = vmatpush2.msra.mxu0 0.0
    %1110 = vmatprep.subr.mxu0 0.0
    %1111 = vmatpush2.msra.mxu0 0.0
    %1112 = vmatprep.subr.mxu0 0.0
    %1113 = vmatpush2.msra.mxu0 0.0
    %1114 = vmatprep.subr.mxu0 0.0
    %1115 = vmatpush2.msra.mxu0 0.0
    %1116 = vmatprep.subr.mxu0 0.0
    %1117 = vmatpush2.msra.mxu0 0.0
    %1118 = vmatprep.subr.mxu0 0.0
    %1119 = vmatpush2.msra.mxu0 0.0
    %1120 = vmatprep.subr.mxu0 0.0
    %1121 = vmatpush2.msra.mxu0 0.0
    %1122 = vmatprep.subr.mxu0 0.0
    %1123 = vmatpush2.msra.mxu0 0.0
    %1124 = vmatprep.subr.mxu0 0.0
    %1125 = vmatpush2.msra.mxu0 0.0
    %1126 = vmatprep.subr.mxu0 0.0
    %1127 = vmatpush2.msra.mxu0 0.0
    %1128 = vmatprep.subr.mxu0 0.0
    %1129 = vmatpush2.msra.mxu0 0.0
    %1130 = vmatprep.subr.mxu0 0.0
    %1131 = vmatpush2.msra.mxu0 0.0
    %1132 = vmatprep.subr.mxu0 0.0
    %1133 = vmatpush2.msra.mxu0 0.0
    %1134 = vmatprep.mubr.f32.mxu0 0.0
    %1135 = vmatmul.mubr.f32.gmra.mxu0 %v1068
    %v1136 = vpop.f32.mrf.mxu0
    %v1137 = vadd.f32 0.0, %v1136
    %v1138 = vpop.f32.mrf.mxu0
    %1139 = vdwg.mxu0
    %v1140 = vmul.f32 %v1061, %v1137
    %s1141 = scalar_lea.vmem %s6, 12
    %v1142 = vld [vmem:[%s1141] sm:$0xf]
    %v1144 = vsel %vm579, %v1142, 0
    %1146 = vmatprep.subr.mxu0 0.0
    %1147 = vmatpush1.msra.mxu0 0.0
    %1148 = vmatprep.subr.mxu0 0.0
    %1149 = vmatpush1.msra.mxu0 0.0
    %1150 = vmatprep.subr.mxu0 0.0
    %1151 = vmatpush1.msra.mxu0 0.0
    %1152 = vmatprep.subr.mxu0 0.0
    %1153 = vmatpush1.msra.mxu0 0.0
    %1154 = vmatprep.subr.mxu0 0.0
    %1155 = vmatpush1.msra.mxu0 0.0
    %1156 = vmatprep.subr.mxu0 0.0
    %1157 = vmatpush1.msra.mxu0 0.0
    %1158 = vmatprep.subr.mxu0 0.0
    %1159 = vmatpush1.msra.mxu0 0.0
    %1160 = vmatprep.subr.mxu0 0.0
    %1161 = vmatpush1.msra.mxu0 0.0
    %1162 = vmatprep.subr.mxu0 0.0
    %1163 = vmatpush1.msra.mxu0 0.0
    %1164 = vmatprep.subr.mxu0 0.0
    %1165 = vmatpush1.msra.mxu0 0.0
    %1166 = vmatprep.subr.mxu0 0.0
    %1167 = vmatpush1.msra.mxu0 0.0
    %1168 = vmatprep.subr.mxu0 0.0
    %1169 = vmatpush1.msra.mxu0 0.0
    %1170 = vmatprep.subr.mxu0 0.0
    %1171 = vmatpush1.msra.mxu0 0.0
    %1172 = vmatprep.subr.mxu0 0.0
    %1173 = vmatpush1.msra.mxu0 0.0
    %1174 = vmatprep.subr.mxu0 0.0
    %1175 = vmatpush1.msra.mxu0 %v561
    %1176 = vmatprep.subr.mxu0 0.0
    %1177 = vmatpush1.msra.mxu0 %v560
    %1178 = vmatprep.subr.mxu0 0.0
    %1179 = vmatpush2.msra.mxu0 0.0
    %1180 = vmatprep.subr.mxu0 0.0
    %1181 = vmatpush2.msra.mxu0 0.0
    %1182 = vmatprep.subr.mxu0 0.0
    %1183 = vmatpush2.msra.mxu0 0.0
    %1184 = vmatprep.subr.mxu0 0.0
    %1185 = vmatpush2.msra.mxu0 0.0
    %1186 = vmatprep.subr.mxu0 0.0
    %1187 = vmatpush2.msra.mxu0 0.0
    %1188 = vmatprep.subr.mxu0 0.0
    %1189 = vmatpush2.msra.mxu0 0.0
    %1190 = vmatprep.subr.mxu0 0.0
    %1191 = vmatpush2.msra.mxu0 0.0
    %1192 = vmatprep.subr.mxu0 0.0
    %1193 = vmatpush2.msra.mxu0 0.0
    %1194 = vmatprep.subr.mxu0 0.0
    %1195 = vmatpush2.msra.mxu0 0.0
    %1196 = vmatprep.subr.mxu0 0.0
    %1197 = vmatpush2.msra.mxu0 0.0
    %1198 = vmatprep.subr.mxu0 0.0
    %1199 = vmatpush2.msra.mxu0 0.0
    %1200 = vmatprep.subr.mxu0 0.0
    %1201 = vmatpush2.msra.mxu0 0.0
    %1202 = vmatprep.subr.mxu0 0.0
    %1203 = vmatpush2.msra.mxu0 0.0
    %1204 = vmatprep.subr.mxu0 0.0
    %1205 = vmatpush2.msra.mxu0 0.0
    %1206 = vmatprep.subr.mxu0 0.0
    %1207 = vmatpush2.msra.mxu0 0.0
    %1208 = vmatprep.subr.mxu0 0.0
    %1209 = vmatpush2.msra.mxu0 0.0
    %1210 = vmatprep.mubr.f32.mxu0 0.0
    %1211 = vmatmul.mubr.f32.gmra.mxu0 %v1144
    %v1212 = vpop.f32.mrf.mxu0
    %v1213 = vadd.f32 0.0, %v1212
    %v1214 = vpop.f32.mrf.mxu0
    %1215 = vdwg.mxu0
    %vm1216 = vcmp.gt.f32.partialorder %v1213, 0.0
    %v1217 = vmin.f32 %v1213, 0.0
    %v1218 = vmul.f32 %v1217, 1.442695
    %v1219 = vpow.pop %v1218
    %v1220 = vsub.f32 %v1219, 1.0
    %v1221 = vsel %vm1216, %v1213, %v1220
    %v1222 = vmul.f32 %v1221, 1.442695
    %v1223 = vpow.pop %v1222
    %v1224 = vmul.f32 %v1223, %v735
    %s1225 = scalar_lea.vmem [#allocation5], 96
    %v1226 = vld [vmem:[%s1225] sm:$0xff]
    %v1227 = vld [vmem:[%s1225 + $0x8] sm:$0xff]
    %v1228 = vld [vmem:[%s1225 + $0x10] sm:$0xff]
    %v1229 = vld [vmem:[%s1225 + $0x18] sm:$0xff]
    %v1231 = vsel %vm109, %v1213, 0
    %1233 = vmatprep.subr.mxu0 0.0
    %1234 = vmatpush1.msra.mxu0 0.0
    %1235 = vmatprep.subr.mxu0 0.0
    %1236 = vmatpush1.msra.mxu0 0.0
    %1237 = vmatprep.subr.mxu0 0.0
    %1238 = vmatpush1.msra.mxu0 0.0
    %1239 = vmatprep.subr.mxu0 0.0
    %1240 = vmatpush1.msra.mxu0 0.0
    %1241 = vmatprep.subr.mxu0 0.0
    %1242 = vmatpush1.msra.mxu0 0.0
    %1243 = vmatprep.subr.mxu0 0.0
    %1244 = vmatpush1.msra.mxu0 0.0
    %1245 = vmatprep.subr.mxu0 0.0
    %1246 = vmatpush1.msra.mxu0 0.0
    %1247 = vmatprep.subr.mxu0 0.0
    %1248 = vmatpush1.msra.mxu0 0.0
    %1249 = vmatprep.subr.mxu0 0.0
    %1250 = vmatpush1.msra.mxu0 0.0
    %1251 = vmatprep.subr.mxu0 0.0
    %1252 = vmatpush1.msra.mxu0 0.0
    %1253 = vmatprep.subr.mxu0 0.0
    %1254 = vmatpush1.msra.mxu0 0.0
    %1255 = vmatprep.subr.mxu0 0.0
    %1256 = vmatpush1.msra.mxu0 0.0
    %1257 = vmatprep.subr.mxu0 0.0
    %1258 = vmatpush1.msra.mxu0 %v1229
    %1259 = vmatprep.subr.mxu0 0.0
    %1260 = vmatpush1.msra.mxu0 %v1228
    %1261 = vmatprep.subr.mxu0 0.0
    %1262 = vmatpush1.msra.mxu0 %v1227
    %1263 = vmatprep.subr.mxu0 0.0
    %1264 = vmatpush1.msra.mxu0 %v1226
    %1265 = vmatprep.subr.mxu0 0.0
    %1266 = vmatpush2.msra.mxu0 0.0
    %1267 = vmatprep.subr.mxu0 0.0
    %1268 = vmatpush2.msra.mxu0 0.0
    %1269 = vmatprep.subr.mxu0 0.0
    %1270 = vmatpush2.msra.mxu0 0.0
    %1271 = vmatprep.subr.mxu0 0.0
    %1272 = vmatpush2.msra.mxu0 0.0
    %1273 = vmatprep.subr.mxu0 0.0
    %1274 = vmatpush2.msra.mxu0 0.0
    %1275 = vmatprep.subr.mxu0 0.0
    %1276 = vmatpush2.msra.mxu0 0.0
    %1277 = vmatprep.subr.mxu0 0.0
    %1278 = vmatpush2.msra.mxu0 0.0
    %1279 = vmatprep.subr.mxu0 0.0
    %1280 = vmatpush2.msra.mxu0 0.0
    %1281 = vmatprep.subr.mxu0 0.0
    %1282 = vmatpush2.msra.mxu0 0.0
    %1283 = vmatprep.subr.mxu0 0.0
    %1284 = vmatpush2.msra.mxu0 0.0
    %1285 = vmatprep.subr.mxu0 0.0
    %1286 = vmatpush2.msra.mxu0 0.0
    %1287 = vmatprep.subr.mxu0 0.0
    %1288 = vmatpush2.msra.mxu0 0.0
    %1289 = vmatprep.subr.mxu0 0.0
    %1290 = vmatpush2.msra.mxu0 0.0
    %1291 = vmatprep.subr.mxu0 0.0
    %1292 = vmatpush2.msra.mxu0 0.0
    %1293 = vmatprep.subr.mxu0 0.0
    %1294 = vmatpush2.msra.mxu0 0.0
    %1295 = vmatprep.subr.mxu0 0.0
    %1296 = vmatpush2.msra.mxu0 0.0
    %1297 = vmatprep.mubr.f32.mxu0 0.0
    %1298 = vmatmul.mubr.f32.gmra.mxu0 %v1231
    %v1299 = vpop.f32.mrf.mxu0
    %v1300 = vadd.f32 0.0, %v1299
    %v1301 = vpop.f32.mrf.mxu0
    %1302 = vdwg.mxu0
    %v1303 = vmul.f32 %v1224, %v1300
    %1305 = vrot.lane.b32.xlu0 %v977, 32
    %v1306 = vpop.permute.xlu0 %1305
    %1309 = vrot.lane.b32.xlu0 %v1140, 64
    %v1310 = vpop.permute.xlu0 %1309
    %1313 = vrot.lane.b32.xlu0 %v1303, 96
    %v1314 = vpop.permute.xlu0 %1313
    %v1316 = vsel %vm109, %v814, %v1306
    %vm1317 = vcmask 523264
    %v1318 = vsel %vm1317, %v1316, %v1310
    %vm1319 = vcmask 785408
    %v1320 = vsel %vm1319, %v1318, %v1314
    %1321 = vst [vmem:[#allocation7] sm:$0xf] %v1320
    // Predicated region
    $region38: #{tpu_custom_call.1} parent=1 // pred_check
      _
    $region39: #{tpu_custom_call.1} parent=1 // pred_check_branch
      %1323 = sbr.rel (0) target = $region41
    $region40: #{tpu_custom_call.1} parent=1 // pred_region
      %s1325 = ssub.s32 64, 64
      %1326 = vsyncadd [#allocation4], %s1325
      %s1328 = sshll.u32 [#allocation7], 4
      %s1329 = int_to_ptr.vmem [resolvable:$true] %s1328
      %1331 = dma.vmem_to_hbm [thread:$0]  %s1329, 64, %s7, [#allocation4]
    $region41: #{tpu_custom_call.1} parent=1 // pred_fallthru
      _
    // Predicated region
    $region42: #{tpu_custom_call.1} parent=1 // pred_check
      _
    $region43: #{tpu_custom_call.1} parent=1 // pred_check_branch
      %1333 = sbr.rel (0) target = $region45
    $region44: #{tpu_custom_call.1} parent=1 // pred_region
      %1334 = dma.done [#allocation4], 64
    $region45: #{tpu_custom_call.1} parent=1 // pred_fallthru
      _
    %1335 = vsyncpa [#allocation3], 1
    %1336 = vsyncpa [#allocation6], 1
    %1337 = vsyncpa [#allocation4], 1

</llo_original>
